<compile_context>
chip_gen: v7x
topology: tpu7x:2x2x1
jax: 0.10.0
libtpu: 0.0.40
codegen_flags: <defaults>
</compile_context>

<pallas_src>
import math

import jax
import jax.numpy as jnp
from jax.experimental import pallas as pl
from jax.experimental.pallas import tpu as pltpu

# Module hyper-parameters (from sbux.py)
HIDDEN_SIZE = 2
INPUT_SIZE = 5
NUM_CLASSES = 1
NUM_LAYERS = 1        # single layer -> hn.view(-1, H) is just (B, H)
SEQ_LENGTH = 8
FC1_SIZE = 128        # == lane width, so fc_1 rows are lane-dense

# --- flat 1-D SMEM scalar array layout (f32; 1-D avoids 2-D SMEM padding) ----
OFF_WIH = 0                                          # W_ih[j,i] at j*I + i   (10)
OFF_WHH = OFF_WIH + HIDDEN_SIZE * INPUT_SIZE         # W_hh[j,k] at j*H + k   (4)
OFF_BRNN = OFF_WHH + HIDDEN_SIZE * HIDDEN_SIZE       # b_ih + b_hh            (2)
OFF_B2 = OFF_BRNN + HIDDEN_SIZE                      # fc bias                (1)
N_SCAL = 32                                          # padded length

# --- VMEM slab layout (8, 128): only lane-wide fc params -----------------------
ROW_W1 = 0                        # rows [0, H)   : W_fc1^T  (H, 128)
ROW_B1 = ROW_W1 + HIDDEN_SIZE     # row 2         : b_fc1
ROW_W2 = ROW_B1 + 1               # row 3         : W_fc row (1, 128)
SLAB_ROWS = 8                     # pad to sublane multiple of 8


def rnn1_kernel(x_ref, scal_ref, slab_ref, out_ref):
    """Whole forward pass, MXU-free.

    x_ref    : (Bblk, S, I)  batch_first input block
    scal_ref : (32,) f32     SMEM scalars (W_ih, W_hh, fused rnn bias, fc bias)
    slab_ref : (8, 128) f32  VMEM slab (W_fc1^T, b_fc1, w_fc row)
    out_ref  : (Bblk, C)
    """
    B, S, I = x_ref.shape
    H = HIDDEN_SIZE

    x = x_ref[...]                                            # (B, S, I)

    # --- SMEM scalar accessors (static indices -> sreg reads) -----------------
    def wih(j, i):
        return scal_ref[OFF_WIH + j * INPUT_SIZE + i]

    def whh(j, k):
        return scal_ref[OFF_WHH + j * HIDDEN_SIZE + k]

    def brnn(j):
        return scal_ref[OFF_BRNN + j]

    # --- hoisted, vectorized input projection ----------------------------------
    # xw_j = b_rnn[j] + sum_i x[:, :, i] * W_ih[j, i]   computed over the whole
    # (B, S) plane with scalar FMAs: I*H = 10 vector ops, all off the serial chain.
    xi = [x[:, :, i:i + 1] for i in range(I)]                 # (B, S, 1) each
    xw = []
    for j in range(H):
        acc = xi[0] * wih(j, 0)
        for i in range(1, I):
            acc = acc + xi[i] * wih(j, i)
        xw.append(acc + brnn(j))                              # (B, S, 1)

    # --- recurrence: h_j <- tanh(xw_j[t] + sum_k W_hh[j,k] * h_k) --------------
    # Hidden state carried as H separate (B,1) lane columns; all FMAs are
    # vector-by-SMEM-scalar, no lane broadcasts inside the serial tanh chain.
    # Fully unrolled (S = 8 fixed) so the LLO scheduler sees across iterations.
    h = [jnp.zeros((B, 1), jnp.float32) for _ in range(H)]
    for t in range(S):
        pre = []
        for j in range(H):
            p = xw[j][:, t, :]                                # (B, 1), h-independent
            for k in range(H):
                p = p + h[k] * whh(j, k)
            pre.append(p)
        h = [jnp.tanh(p) for p in pre]                        # H independent EUP ops

    # --- hn.view(-1, H) -> ReLU -> fc_1 -> ReLU --------------------------------
    # Only H = 2 lane broadcasts total, after the recurrence; full 128-lane rows.
    z1 = slab_ref[ROW_B1:ROW_B1 + 1, :]                       # (1, 128)
    for k in range(H):
        hr = jnp.maximum(h[k], 0.0)                           # (B, 1)
        z1 = z1 + hr * slab_ref[ROW_W1 + k:ROW_W1 + k + 1, :] # -> (B, 128)
    z1 = jnp.maximum(z1, 0.0)                                 # (B, 128)

    # --- fc: (B,128)@(128,1) as VPU multiply + XLU lane reduction --------------
    w2_row = slab_ref[ROW_W2:ROW_W2 + 1, :]                   # (1, 128)
    out_ref[...] = jnp.sum(z1 * w2_row, axis=-1, keepdims=True) + scal_ref[OFF_B2]


def pack_scalars(params):
    """Flat 1-D f32 SMEM array with the tiny recurrence / bias parameters."""
    scal = jnp.zeros((N_SCAL,), jnp.float32)
    scal = scal.at[OFF_WIH:OFF_WIH + HIDDEN_SIZE * INPUT_SIZE].set(
        params["w_ih"].reshape(-1).astype(jnp.float32))
    scal = scal.at[OFF_WHH:OFF_WHH + HIDDEN_SIZE * HIDDEN_SIZE].set(
        params["w_hh"].reshape(-1).astype(jnp.float32))
    scal = scal.at[OFF_BRNN:OFF_BRNN + HIDDEN_SIZE].set(
        (params["b_ih"] + params["b_hh"]).astype(jnp.float32))
    scal = scal.at[OFF_B2].set(params["b2"].reshape(()).astype(jnp.float32))
    return scal


def pack_slab(params):
    """(8, 128) f32 VMEM slab with the lane-dense fc parameters."""
    slab = jnp.zeros((SLAB_ROWS, FC1_SIZE), jnp.float32)
    slab = slab.at[ROW_W1:ROW_W1 + HIDDEN_SIZE, :].set(params["w1"].T.astype(jnp.float32))
    slab = slab.at[ROW_B1, :].set(params["b1"].astype(jnp.float32))
    slab = slab.at[ROW_W2, :].set(params["w2"].reshape(-1).astype(jnp.float32))
    return slab


def _round_up(n, m):
    return ((n + m - 1) // m) * m


def rnn1_forward(x, scal, slab, *, block_b=512):
    """x: (B, S, I) float32 (PyTorch batch_first layout, no wrapper transpose)."""
    B, S, I = x.shape
    assert I == INPUT_SIZE

    # Batch grid: big blocks (>=8 sublanes) amortize the ~0.35us per-step
    # overhead; pad B so there is never a partial tail block, slice after.
    bb = min(block_b, _round_up(B, 8))
    Bp = _round_up(B, bb)
    if Bp != B:
        x = jnp.pad(x, ((0, Bp - B), (0, 0), (0, 0)))

    out = pl.pallas_call(
        rnn1_kernel,
        out_shape=jax.ShapeDtypeStruct((Bp, NUM_CLASSES), jnp.float32),
        grid=(Bp // bb,),
        in_specs=[
            pl.BlockSpec((bb, S, I), lambda b: (b, 0, 0)),
            pl.BlockSpec(memory_space=pltpu.MemorySpace.SMEM),        # scalars, whole array
            pl.BlockSpec((SLAB_ROWS, FC1_SIZE), lambda b: (0, 0)),    # slab: constant, 1 DMA
        ],
        out_specs=pl.BlockSpec((bb, NUM_CLASSES), lambda b: (b, 0)),
        compiler_params=pltpu.CompilerParams(
            dimension_semantics=("parallel",)),   # shards batch across v7x's 2 TCs
    )(x.astype(jnp.float32), scal, slab)
    return out[:B]


def rnn1_reference(x, params):
    """Pure-JAX reference of the same forward pass (for a sanity check)."""
    B = x.shape[0]
    h = jnp.zeros((B, HIDDEN_SIZE), jnp.float32)
    for t in range(x.shape[1]):
        h = jnp.tanh(x[:, t, :] @ params["w_ih"].T + params["b_ih"]
                     + h @ params["w_hh"].T + params["b_hh"])
    out = jnp.maximum(h, 0.0)
    out = jnp.maximum(out @ params["w1"].T + params["b1"], 0.0)
    return out @ params["w2"].T + params["b2"]


def make_params(key):
    """Deterministic init mimicking PyTorch's default uniform(-1/sqrt(fan), +)."""
    ks = jax.random.split(key, 8)

    def uni(k, shape, bound):
        return jax.random.uniform(k, shape, jnp.float32, -bound, bound)

    k_rnn = 1.0 / math.sqrt(HIDDEN_SIZE)
    k_fc1 = 1.0 / math.sqrt(HIDDEN_SIZE)     # fc_1 fan_in = hidden_size
    k_fc2 = 1.0 / math.sqrt(FC1_SIZE)        # fc   fan_in = 128
    return {
        "w_ih": uni(ks[0], (HIDDEN_SIZE, INPUT_SIZE), k_rnn),
        "w_hh": uni(ks[1], (HIDDEN_SIZE, HIDDEN_SIZE), k_rnn),
        "b_ih": uni(ks[2], (HIDDEN_SIZE,), k_rnn),
        "b_hh": uni(ks[3], (HIDDEN_SIZE,), k_rnn),
        "w1":   uni(ks[4], (FC1_SIZE, HIDDEN_SIZE), k_fc1),
        "b1":   uni(ks[5], (FC1_SIZE,), k_fc1),
        "w2":   uni(ks[6], (NUM_CLASSES, FC1_SIZE), k_fc2),
        "b2":   uni(ks[7], (NUM_CLASSES,), k_fc2),
    }


if __name__ == "__main__":
    key = jax.random.PRNGKey(0)
    kx, kp = jax.random.split(key)

    batch = 2
    x = jax.random.normal(kx, (batch, SEQ_LENGTH, INPUT_SIZE), jnp.float32)
    params = make_params(kp)

    scal = jax.block_until_ready(pack_scalars(params))   # one-time packing
    slab = jax.block_until_ready(pack_slab(params))

    out = rnn1_forward(x, scal, slab)
    out = jax.block_until_ready(out)

    ref = rnn1_reference(x, params)
    assert out.shape == (batch, NUM_CLASSES)
    assert jnp.allclose(out, ref, atol=1e-5, rtol=1e-5), (out, ref)

    print("KERNEL_OK")
</pallas_src>

<mosaic_0001>
module attributes {stable_mosaic.version = 11 : i64} {
  func.func @rnn1_kernel(%arg0: i32, %arg1: memref<8x8x5xf32, #tpu.memory_space<vmem>>, %arg2: memref<32xf32, #tpu.memory_space<smem>>, %arg3: memref<8x128xf32, #tpu.memory_space<vmem>>, %arg4: memref<8x1xf32, #tpu.memory_space<vmem>>) attributes {dimension_semantics = [#tpu.dimension_semantics<parallel>], iteration_bounds = array<i64: 1>, scalar_prefetch = 0 : i64, scratch_operands = 0 : i64, tpu.core_type = #tpu.core_type<tc>, window_params = [{transform_indices = @transform_0, window_bounds = array<i64: 8, 8, 5>}, {transform_indices = @transform_1, window_bounds = array<i64: 32>}, {pipeline_mode = #tpu.pipeline_mode<synchronous>, transform_indices = @transform_2, window_bounds = array<i64: 8, 128>}, {transform_indices = @transform_3, window_bounds = array<i64: 8, 1>}]} {
    %c0 = arith.constant 0 : index
    %c0_0 = arith.constant 0 : index
    %c0_1 = arith.constant 0 : index
    %0 = vector.load %arg1[%c0, %c0_0, %c0_1] : memref<8x8x5xf32, #tpu.memory_space<vmem>>, vector<8x8x5xf32>
    %1 = vector.extract_strided_slice %0 {offsets = [0, 0, 0], sizes = [8, 8, 1], strides = [1, 1, 1]} : vector<8x8x5xf32> to vector<8x8x1xf32>
    %2 = vector.extract_strided_slice %0 {offsets = [0, 0, 1], sizes = [8, 8, 1], strides = [1, 1, 1]} : vector<8x8x5xf32> to vector<8x8x1xf32>
    %3 = vector.extract_strided_slice %0 {offsets = [0, 0, 2], sizes = [8, 8, 1], strides = [1, 1, 1]} : vector<8x8x5xf32> to vector<8x8x1xf32>
    %4 = vector.extract_strided_slice %0 {offsets = [0, 0, 3], sizes = [8, 8, 1], strides = [1, 1, 1]} : vector<8x8x5xf32> to vector<8x8x1xf32>
    %5 = vector.extract_strided_slice %0 {offsets = [0, 0, 4], sizes = [8, 8, 1], strides = [1, 1, 1]} : vector<8x8x5xf32> to vector<8x8x1xf32>
    %c0_2 = arith.constant 0 : index
    %6 = memref.load %arg2[%c0_2] : memref<32xf32, #tpu.memory_space<smem>>
    %7 = vector.broadcast %6 : f32 to vector<8x8x1xf32>
    %8 = arith.mulf %1, %7 : vector<8x8x1xf32>
    %c1 = arith.constant 1 : index
    %9 = memref.load %arg2[%c1] : memref<32xf32, #tpu.memory_space<smem>>
    %10 = vector.broadcast %9 : f32 to vector<8x8x1xf32>
    %11 = arith.mulf %2, %10 : vector<8x8x1xf32>
    %12 = arith.addf %8, %11 : vector<8x8x1xf32>
    %c2 = arith.constant 2 : index
    %13 = memref.load %arg2[%c2] : memref<32xf32, #tpu.memory_space<smem>>
    %14 = vector.broadcast %13 : f32 to vector<8x8x1xf32>
    %15 = arith.mulf %3, %14 : vector<8x8x1xf32>
    %16 = arith.addf %12, %15 : vector<8x8x1xf32>
    %c3 = arith.constant 3 : index
    %17 = memref.load %arg2[%c3] : memref<32xf32, #tpu.memory_space<smem>>
    %18 = vector.broadcast %17 : f32 to vector<8x8x1xf32>
    %19 = arith.mulf %4, %18 : vector<8x8x1xf32>
    %20 = arith.addf %16, %19 : vector<8x8x1xf32>
    %c4 = arith.constant 4 : index
    %21 = memref.load %arg2[%c4] : memref<32xf32, #tpu.memory_space<smem>>
    %22 = vector.broadcast %21 : f32 to vector<8x8x1xf32>
    %23 = arith.mulf %5, %22 : vector<8x8x1xf32>
    %24 = arith.addf %20, %23 : vector<8x8x1xf32>
    %c14 = arith.constant 14 : index
    %25 = memref.load %arg2[%c14] : memref<32xf32, #tpu.memory_space<smem>>
    %26 = vector.broadcast %25 : f32 to vector<8x8x1xf32>
    %27 = arith.addf %24, %26 : vector<8x8x1xf32>
    %c5 = arith.constant 5 : index
    %28 = memref.load %arg2[%c5] : memref<32xf32, #tpu.memory_space<smem>>
    %29 = vector.broadcast %28 : f32 to vector<8x8x1xf32>
    %30 = arith.mulf %1, %29 : vector<8x8x1xf32>
    %c6 = arith.constant 6 : index
    %31 = memref.load %arg2[%c6] : memref<32xf32, #tpu.memory_space<smem>>
    %32 = vector.broadcast %31 : f32 to vector<8x8x1xf32>
    %33 = arith.mulf %2, %32 : vector<8x8x1xf32>
    %34 = arith.addf %30, %33 : vector<8x8x1xf32>
    %c7 = arith.constant 7 : index
    %35 = memref.load %arg2[%c7] : memref<32xf32, #tpu.memory_space<smem>>
    %36 = vector.broadcast %35 : f32 to vector<8x8x1xf32>
    %37 = arith.mulf %3, %36 : vector<8x8x1xf32>
    %38 = arith.addf %34, %37 : vector<8x8x1xf32>
    %c8 = arith.constant 8 : index
    %39 = memref.load %arg2[%c8] : memref<32xf32, #tpu.memory_space<smem>>
    %40 = vector.broadcast %39 : f32 to vector<8x8x1xf32>
    %41 = arith.mulf %4, %40 : vector<8x8x1xf32>
    %42 = arith.addf %38, %41 : vector<8x8x1xf32>
    %c9 = arith.constant 9 : index
    %43 = memref.load %arg2[%c9] : memref<32xf32, #tpu.memory_space<smem>>
    %44 = vector.broadcast %43 : f32 to vector<8x8x1xf32>
    %45 = arith.mulf %5, %44 : vector<8x8x1xf32>
    %46 = arith.addf %42, %45 : vector<8x8x1xf32>
    %c15 = arith.constant 15 : index
    %47 = memref.load %arg2[%c15] : memref<32xf32, #tpu.memory_space<smem>>
    %48 = vector.broadcast %47 : f32 to vector<8x8x1xf32>
    %49 = arith.addf %46, %48 : vector<8x8x1xf32>
    %cst = arith.constant 0.000000e+00 : f32
    %50 = vector.broadcast %cst : f32 to vector<8x1xf32>
    %cst_3 = arith.constant 0.000000e+00 : f32
    %51 = vector.broadcast %cst_3 : f32 to vector<8x1xf32>
    %52 = vector.extract_strided_slice %27 {offsets = [0, 0, 0], sizes = [8, 1, 1], strides = [1, 1, 1]} : vector<8x8x1xf32> to vector<8x1x1xf32>
    %53 = vector.shape_cast %52 : vector<8x1x1xf32> to vector<8x1xf32>
    %c10 = arith.constant 10 : index
    %54 = memref.load %arg2[%c10] : memref<32xf32, #tpu.memory_space<smem>>
    %55 = vector.broadcast %54 : f32 to vector<8x1xf32>
    %56 = arith.mulf %50, %55 : vector<8x1xf32>
    %57 = arith.addf %53, %56 : vector<8x1xf32>
    %c11 = arith.constant 11 : index
    %58 = memref.load %arg2[%c11] : memref<32xf32, #tpu.memory_space<smem>>
    %59 = vector.broadcast %58 : f32 to vector<8x1xf32>
    %60 = arith.mulf %51, %59 : vector<8x1xf32>
    %61 = arith.addf %57, %60 : vector<8x1xf32>
    %62 = vector.extract_strided_slice %49 {offsets = [0, 0, 0], sizes = [8, 1, 1], strides = [1, 1, 1]} : vector<8x8x1xf32> to vector<8x1x1xf32>
    %63 = vector.shape_cast %62 : vector<8x1x1xf32> to vector<8x1xf32>
    %c12 = arith.constant 12 : index
    %64 = memref.load %arg2[%c12] : memref<32xf32, #tpu.memory_space<smem>>
    %65 = vector.broadcast %64 : f32 to vector<8x1xf32>
    %66 = arith.mulf %50, %65 : vector<8x1xf32>
    %67 = arith.addf %63, %66 : vector<8x1xf32>
    %c13 = arith.constant 13 : index
    %68 = memref.load %arg2[%c13] : memref<32xf32, #tpu.memory_space<smem>>
    %69 = vector.broadcast %68 : f32 to vector<8x1xf32>
    %70 = arith.mulf %51, %69 : vector<8x1xf32>
    %71 = arith.addf %67, %70 : vector<8x1xf32>
    %72 = math.tanh %61 : vector<8x1xf32>
    %73 = math.tanh %71 : vector<8x1xf32>
    %74 = vector.extract_strided_slice %27 {offsets = [0, 1, 0], sizes = [8, 1, 1], strides = [1, 1, 1]} : vector<8x8x1xf32> to vector<8x1x1xf32>
    %75 = vector.shape_cast %74 : vector<8x1x1xf32> to vector<8x1xf32>
    %c10_4 = arith.constant 10 : index
    %76 = memref.load %arg2[%c10_4] : memref<32xf32, #tpu.memory_space<smem>>
    %77 = vector.broadcast %76 : f32 to vector<8x1xf32>
    %78 = arith.mulf %72, %77 : vector<8x1xf32>
    %79 = arith.addf %75, %78 : vector<8x1xf32>
    %c11_5 = arith.constant 11 : index
    %80 = memref.load %arg2[%c11_5] : memref<32xf32, #tpu.memory_space<smem>>
    %81 = vector.broadcast %80 : f32 to vector<8x1xf32>
    %82 = arith.mulf %73, %81 : vector<8x1xf32>
    %83 = arith.addf %79, %82 : vector<8x1xf32>
    %84 = vector.extract_strided_slice %49 {offsets = [0, 1, 0], sizes = [8, 1, 1], strides = [1, 1, 1]} : vector<8x8x1xf32> to vector<8x1x1xf32>
    %85 = vector.shape_cast %84 : vector<8x1x1xf32> to vector<8x1xf32>
    %c12_6 = arith.constant 12 : index
    %86 = memref.load %arg2[%c12_6] : memref<32xf32, #tpu.memory_space<smem>>
    %87 = vector.broadcast %86 : f32 to vector<8x1xf32>
    %88 = arith.mulf %72, %87 : vector<8x1xf32>
    %89 = arith.addf %85, %88 : vector<8x1xf32>
    %c13_7 = arith.constant 13 : index
    %90 = memref.load %arg2[%c13_7] : memref<32xf32, #tpu.memory_space<smem>>
    %91 = vector.broadcast %90 : f32 to vector<8x1xf32>
    %92 = arith.mulf %73, %91 : vector<8x1xf32>
    %93 = arith.addf %89, %92 : vector<8x1xf32>
    %94 = math.tanh %83 : vector<8x1xf32>
    %95 = math.tanh %93 : vector<8x1xf32>
    %96 = vector.extract_strided_slice %27 {offsets = [0, 2, 0], sizes = [8, 1, 1], strides = [1, 1, 1]} : vector<8x8x1xf32> to vector<8x1x1xf32>
    %97 = vector.shape_cast %96 : vector<8x1x1xf32> to vector<8x1xf32>
    %c10_8 = arith.constant 10 : index
    %98 = memref.load %arg2[%c10_8] : memref<32xf32, #tpu.memory_space<smem>>
    %99 = vector.broadcast %98 : f32 to vector<8x1xf32>
    %100 = arith.mulf %94, %99 : vector<8x1xf32>
    %101 = arith.addf %97, %100 : vector<8x1xf32>
    %c11_9 = arith.constant 11 : index
    %102 = memref.load %arg2[%c11_9] : memref<32xf32, #tpu.memory_space<smem>>
    %103 = vector.broadcast %102 : f32 to vector<8x1xf32>
    %104 = arith.mulf %95, %103 : vector<8x1xf32>
    %105 = arith.addf %101, %104 : vector<8x1xf32>
    %106 = vector.extract_strided_slice %49 {offsets = [0, 2, 0], sizes = [8, 1, 1], strides = [1, 1, 1]} : vector<8x8x1xf32> to vector<8x1x1xf32>
    %107 = vector.shape_cast %106 : vector<8x1x1xf32> to vector<8x1xf32>
    %c12_10 = arith.constant 12 : index
    %108 = memref.load %arg2[%c12_10] : memref<32xf32, #tpu.memory_space<smem>>
    %109 = vector.broadcast %108 : f32 to vector<8x1xf32>
    %110 = arith.mulf %94, %109 : vector<8x1xf32>
    %111 = arith.addf %107, %110 : vector<8x1xf32>
    %c13_11 = arith.constant 13 : index
    %112 = memref.load %arg2[%c13_11] : memref<32xf32, #tpu.memory_space<smem>>
    %113 = vector.broadcast %112 : f32 to vector<8x1xf32>
    %114 = arith.mulf %95, %113 : vector<8x1xf32>
    %115 = arith.addf %111, %114 : vector<8x1xf32>
    %116 = math.tanh %105 : vector<8x1xf32>
    %117 = math.tanh %115 : vector<8x1xf32>
    %118 = vector.extract_strided_slice %27 {offsets = [0, 3, 0], sizes = [8, 1, 1], strides = [1, 1, 1]} : vector<8x8x1xf32> to vector<8x1x1xf32>
    %119 = vector.shape_cast %118 : vector<8x1x1xf32> to vector<8x1xf32>
    %c10_12 = arith.constant 10 : index
    %120 = memref.load %arg2[%c10_12] : memref<32xf32, #tpu.memory_space<smem>>
    %121 = vector.broadcast %120 : f32 to vector<8x1xf32>
    %122 = arith.mulf %116, %121 : vector<8x1xf32>
    %123 = arith.addf %119, %122 : vector<8x1xf32>
    %c11_13 = arith.constant 11 : index
    %124 = memref.load %arg2[%c11_13] : memref<32xf32, #tpu.memory_space<smem>>
    %125 = vector.broadcast %124 : f32 to vector<8x1xf32>
    %126 = arith.mulf %117, %125 : vector<8x1xf32>
    %127 = arith.addf %123, %126 : vector<8x1xf32>
    %128 = vector.extract_strided_slice %49 {offsets = [0, 3, 0], sizes = [8, 1, 1], strides = [1, 1, 1]} : vector<8x8x1xf32> to vector<8x1x1xf32>
    %129 = vector.shape_cast %128 : vector<8x1x1xf32> to vector<8x1xf32>
    %c12_14 = arith.constant 12 : index
    %130 = memref.load %arg2[%c12_14] : memref<32xf32, #tpu.memory_space<smem>>
    %131 = vector.broadcast %130 : f32 to vector<8x1xf32>
    %132 = arith.mulf %116, %131 : vector<8x1xf32>
    %133 = arith.addf %129, %132 : vector<8x1xf32>
    %c13_15 = arith.constant 13 : index
    %134 = memref.load %arg2[%c13_15] : memref<32xf32, #tpu.memory_space<smem>>
    %135 = vector.broadcast %134 : f32 to vector<8x1xf32>
    %136 = arith.mulf %117, %135 : vector<8x1xf32>
    %137 = arith.addf %133, %136 : vector<8x1xf32>
    %138 = math.tanh %127 : vector<8x1xf32>
    %139 = math.tanh %137 : vector<8x1xf32>
    %140 = vector.extract_strided_slice %27 {offsets = [0, 4, 0], sizes = [8, 1, 1], strides = [1, 1, 1]} : vector<8x8x1xf32> to vector<8x1x1xf32>
    %141 = vector.shape_cast %140 : vector<8x1x1xf32> to vector<8x1xf32>
    %c10_16 = arith.constant 10 : index
    %142 = memref.load %arg2[%c10_16] : memref<32xf32, #tpu.memory_space<smem>>
    %143 = vector.broadcast %142 : f32 to vector<8x1xf32>
    %144 = arith.mulf %138, %143 : vector<8x1xf32>
    %145 = arith.addf %141, %144 : vector<8x1xf32>
    %c11_17 = arith.constant 11 : index
    %146 = memref.load %arg2[%c11_17] : memref<32xf32, #tpu.memory_space<smem>>
    %147 = vector.broadcast %146 : f32 to vector<8x1xf32>
    %148 = arith.mulf %139, %147 : vector<8x1xf32>
    %149 = arith.addf %145, %148 : vector<8x1xf32>
    %150 = vector.extract_strided_slice %49 {offsets = [0, 4, 0], sizes = [8, 1, 1], strides = [1, 1, 1]} : vector<8x8x1xf32> to vector<8x1x1xf32>
    %151 = vector.shape_cast %150 : vector<8x1x1xf32> to vector<8x1xf32>
    %c12_18 = arith.constant 12 : index
    %152 = memref.load %arg2[%c12_18] : memref<32xf32, #tpu.memory_space<smem>>
    %153 = vector.broadcast %152 : f32 to vector<8x1xf32>
    %154 = arith.mulf %138, %153 : vector<8x1xf32>
    %155 = arith.addf %151, %154 : vector<8x1xf32>
    %c13_19 = arith.constant 13 : index
    %156 = memref.load %arg2[%c13_19] : memref<32xf32, #tpu.memory_space<smem>>
    %157 = vector.broadcast %156 : f32 to vector<8x1xf32>
    %158 = arith.mulf %139, %157 : vector<8x1xf32>
    %159 = arith.addf %155, %158 : vector<8x1xf32>
    %160 = math.tanh %149 : vector<8x1xf32>
    %161 = math.tanh %159 : vector<8x1xf32>
    %162 = vector.extract_strided_slice %27 {offsets = [0, 5, 0], sizes = [8, 1, 1], strides = [1, 1, 1]} : vector<8x8x1xf32> to vector<8x1x1xf32>
    %163 = vector.shape_cast %162 : vector<8x1x1xf32> to vector<8x1xf32>
    %c10_20 = arith.constant 10 : index
    %164 = memref.load %arg2[%c10_20] : memref<32xf32, #tpu.memory_space<smem>>
    %165 = vector.broadcast %164 : f32 to vector<8x1xf32>
    %166 = arith.mulf %160, %165 : vector<8x1xf32>
    %167 = arith.addf %163, %166 : vector<8x1xf32>
    %c11_21 = arith.constant 11 : index
    %168 = memref.load %arg2[%c11_21] : memref<32xf32, #tpu.memory_space<smem>>
    %169 = vector.broadcast %168 : f32 to vector<8x1xf32>
    %170 = arith.mulf %161, %169 : vector<8x1xf32>
    %171 = arith.addf %167, %170 : vector<8x1xf32>
    %172 = vector.extract_strided_slice %49 {offsets = [0, 5, 0], sizes = [8, 1, 1], strides = [1, 1, 1]} : vector<8x8x1xf32> to vector<8x1x1xf32>
    %173 = vector.shape_cast %172 : vector<8x1x1xf32> to vector<8x1xf32>
    %c12_22 = arith.constant 12 : index
    %174 = memref.load %arg2[%c12_22] : memref<32xf32, #tpu.memory_space<smem>>
    %175 = vector.broadcast %174 : f32 to vector<8x1xf32>
    %176 = arith.mulf %160, %175 : vector<8x1xf32>
    %177 = arith.addf %173, %176 : vector<8x1xf32>
    %c13_23 = arith.constant 13 : index
    %178 = memref.load %arg2[%c13_23] : memref<32xf32, #tpu.memory_space<smem>>
    %179 = vector.broadcast %178 : f32 to vector<8x1xf32>
    %180 = arith.mulf %161, %179 : vector<8x1xf32>
    %181 = arith.addf %177, %180 : vector<8x1xf32>
    %182 = math.tanh %171 : vector<8x1xf32>
    %183 = math.tanh %181 : vector<8x1xf32>
    %184 = vector.extract_strided_slice %27 {offsets = [0, 6, 0], sizes = [8, 1, 1], strides = [1, 1, 1]} : vector<8x8x1xf32> to vector<8x1x1xf32>
    %185 = vector.shape_cast %184 : vector<8x1x1xf32> to vector<8x1xf32>
    %c10_24 = arith.constant 10 : index
    %186 = memref.load %arg2[%c10_24] : memref<32xf32, #tpu.memory_space<smem>>
    %187 = vector.broadcast %186 : f32 to vector<8x1xf32>
    %188 = arith.mulf %182, %187 : vector<8x1xf32>
    %189 = arith.addf %185, %188 : vector<8x1xf32>
    %c11_25 = arith.constant 11 : index
    %190 = memref.load %arg2[%c11_25] : memref<32xf32, #tpu.memory_space<smem>>
    %191 = vector.broadcast %190 : f32 to vector<8x1xf32>
    %192 = arith.mulf %183, %191 : vector<8x1xf32>
    %193 = arith.addf %189, %192 : vector<8x1xf32>
    %194 = vector.extract_strided_slice %49 {offsets = [0, 6, 0], sizes = [8, 1, 1], strides = [1, 1, 1]} : vector<8x8x1xf32> to vector<8x1x1xf32>
    %195 = vector.shape_cast %194 : vector<8x1x1xf32> to vector<8x1xf32>
    %c12_26 = arith.constant 12 : index
    %196 = memref.load %arg2[%c12_26] : memref<32xf32, #tpu.memory_space<smem>>
    %197 = vector.broadcast %196 : f32 to vector<8x1xf32>
    %198 = arith.mulf %182, %197 : vector<8x1xf32>
    %199 = arith.addf %195, %198 : vector<8x1xf32>
    %c13_27 = arith.constant 13 : index
    %200 = memref.load %arg2[%c13_27] : memref<32xf32, #tpu.memory_space<smem>>
    %201 = vector.broadcast %200 : f32 to vector<8x1xf32>
    %202 = arith.mulf %183, %201 : vector<8x1xf32>
    %203 = arith.addf %199, %202 : vector<8x1xf32>
    %204 = math.tanh %193 : vector<8x1xf32>
    %205 = math.tanh %203 : vector<8x1xf32>
    %206 = vector.extract_strided_slice %27 {offsets = [0, 7, 0], sizes = [8, 1, 1], strides = [1, 1, 1]} : vector<8x8x1xf32> to vector<8x1x1xf32>
    %207 = vector.shape_cast %206 : vector<8x1x1xf32> to vector<8x1xf32>
    %c10_28 = arith.constant 10 : index
    %208 = memref.load %arg2[%c10_28] : memref<32xf32, #tpu.memory_space<smem>>
    %209 = vector.broadcast %208 : f32 to vector<8x1xf32>
    %210 = arith.mulf %204, %209 : vector<8x1xf32>
    %211 = arith.addf %207, %210 : vector<8x1xf32>
    %c11_29 = arith.constant 11 : index
    %212 = memref.load %arg2[%c11_29] : memref<32xf32, #tpu.memory_space<smem>>
    %213 = vector.broadcast %212 : f32 to vector<8x1xf32>
    %214 = arith.mulf %205, %213 : vector<8x1xf32>
    %215 = arith.addf %211, %214 : vector<8x1xf32>
    %216 = vector.extract_strided_slice %49 {offsets = [0, 7, 0], sizes = [8, 1, 1], strides = [1, 1, 1]} : vector<8x8x1xf32> to vector<8x1x1xf32>
    %217 = vector.shape_cast %216 : vector<8x1x1xf32> to vector<8x1xf32>
    %c12_30 = arith.constant 12 : index
    %218 = memref.load %arg2[%c12_30] : memref<32xf32, #tpu.memory_space<smem>>
    %219 = vector.broadcast %218 : f32 to vector<8x1xf32>
    %220 = arith.mulf %204, %219 : vector<8x1xf32>
    %221 = arith.addf %217, %220 : vector<8x1xf32>
    %c13_31 = arith.constant 13 : index
    %222 = memref.load %arg2[%c13_31] : memref<32xf32, #tpu.memory_space<smem>>
    %223 = vector.broadcast %222 : f32 to vector<8x1xf32>
    %224 = arith.mulf %205, %223 : vector<8x1xf32>
    %225 = arith.addf %221, %224 : vector<8x1xf32>
    %226 = math.tanh %215 : vector<8x1xf32>
    %227 = math.tanh %225 : vector<8x1xf32>
    %c2_32 = arith.constant 2 : index
    %c0_33 = arith.constant 0 : index
    %228 = vector.load %arg3[%c2_32, %c0_33] : memref<8x128xf32, #tpu.memory_space<vmem>>, vector<1x128xf32>
    %cst_34 = arith.constant 0.000000e+00 : f32
    %229 = vector.broadcast %cst_34 : f32 to vector<8x1xf32>
    %230 = arith.maximumf %226, %229 : vector<8x1xf32>
    %c0_35 = arith.constant 0 : index
    %c0_36 = arith.constant 0 : index
    %231 = vector.load %arg3[%c0_35, %c0_36] : memref<8x128xf32, #tpu.memory_space<vmem>>, vector<1x128xf32>
    %232 = vector.broadcast %230 : vector<8x1xf32> to vector<8x128xf32>
    %233 = vector.broadcast %231 : vector<1x128xf32> to vector<8x128xf32>
    %234 = arith.mulf %232, %233 : vector<8x128xf32>
    %235 = vector.broadcast %228 : vector<1x128xf32> to vector<8x128xf32>
    %236 = arith.addf %235, %234 : vector<8x128xf32>
    %cst_37 = arith.constant 0.000000e+00 : f32
    %237 = vector.broadcast %cst_37 : f32 to vector<8x1xf32>
    %238 = arith.maximumf %227, %237 : vector<8x1xf32>
    %c1_38 = arith.constant 1 : index
    %c0_39 = arith.constant 0 : index
    %239 = vector.load %arg3[%c1_38, %c0_39] : memref<8x128xf32, #tpu.memory_space<vmem>>, vector<1x128xf32>
    %240 = vector.broadcast %238 : vector<8x1xf32> to vector<8x128xf32>
    %241 = vector.broadcast %239 : vector<1x128xf32> to vector<8x128xf32>
    %242 = arith.mulf %240, %241 : vector<8x128xf32>
    %243 = arith.addf %236, %242 : vector<8x128xf32>
    %cst_40 = arith.constant 0.000000e+00 : f32
    %244 = vector.broadcast %cst_40 : f32 to vector<8x128xf32>
    %245 = arith.maximumf %243, %244 : vector<8x128xf32>
    %c3_41 = arith.constant 3 : index
    %c0_42 = arith.constant 0 : index
    %246 = vector.load %arg3[%c3_41, %c0_42] : memref<8x128xf32, #tpu.memory_space<vmem>>, vector<1x128xf32>
    %247 = vector.broadcast %246 : vector<1x128xf32> to vector<8x128xf32>
    %248 = arith.mulf %245, %247 : vector<8x128xf32>
    %cst_43 = arith.constant dense<0.000000e+00> : vector<8xf32>
    %249 = vector.multi_reduction <add>, %248, %cst_43 [1] : vector<8x128xf32> to vector<8xf32>
    %250 = vector.shape_cast %249 : vector<8xf32> to vector<8x1xf32>
    %c16 = arith.constant 16 : index
    %251 = memref.load %arg2[%c16] : memref<32xf32, #tpu.memory_space<smem>>
    %252 = vector.broadcast %251 : f32 to vector<8x1xf32>
    %253 = arith.addf %250, %252 : vector<8x1xf32>
    %c0_44 = arith.constant 0 : index
    %c0_45 = arith.constant 0 : index
    %254 = vector.load %arg4[%c0_44, %c0_45] : memref<8x1xf32, #tpu.memory_space<vmem>>, vector<8x1xf32>
    tpu.vector_store %arg4[%c0_44, %c0_45], %253 {strides = array<i32>} : memref<8x1xf32, #tpu.memory_space<vmem>>, vector<8x1xf32>,
    return
  }
  func.func @transform_0(%arg0: i32) -> (i32, i32, i32) {
    %c0_i32 = arith.constant 0 : i32
    %c0_i32_0 = arith.constant 0 : i32
    %c0_i32_1 = arith.constant 0 : i32
    return %arg0, %c0_i32, %c0_i32_0 : i32, i32, i32
  }
  func.func @transform_1(%arg0: i32) -> i32 {
    %c0_i32 = arith.constant 0 : i32
    %c0_i32_0 = arith.constant 0 : i32
    return %c0_i32 : i32
  }
  func.func @transform_2(%arg0: i32) -> (i32, i32) {
    %c0_i32 = arith.constant 0 : i32
    %c0_i32_0 = arith.constant 0 : i32
    %c0_i32_1 = arith.constant 0 : i32
    return %c0_i32, %c0_i32_0 : i32, i32
  }
  func.func @transform_3(%arg0: i32) -> (i32, i32) {
    %c0_i32 = arith.constant 0 : i32
    %c0_i32_0 = arith.constant 0 : i32
    return %arg0, %c0_i32 : i32, i32
  }
}

</mosaic_0001>

<llo_original>
// kernel: tpu_custom_call.1
$region0: #{tpu_custom_call.1}
  #allocation0 [shape = 'u32[]', space=smem, size = 0x4, offset = 0x4, fixed_abs, tag = 'smem constant byte address 0x4 - core index']
  #allocation1 [shape = 'u32[144,128]{1,0:T(1,128)}', space=vmem, size = 0x12000, scoped, tag = 'internal scratch']
  %s0 = inlined_call_operand.vmem [shape: f32[8,8,5], index: 0, kind: input, shape index: {}]
  %s1 = inlined_call_operand.vmem [shape: f32[32], index: 1, kind: input, shape index: {}]
  %s2 = inlined_call_operand.vmem [shape: f32[8,128], index: 2, kind: input, shape index: {}]
  %s3 = inlined_call_operand.vmem [shape: f32[8,1], index: 3, kind: output, shape index: {}]
  %s4 = sld [smem:[#allocation0]]
  $region26: #{tpu_custom_call.1} parent=0
    _
  %s6 = ssub.s32 1, %s4
  %s7 = scalar_select 0, %s6, %s4
  $region1: #{tpu_custom_call.1} parent=0
    #allocation2 [shape = 'u8[512]{0}', space=smem, size = 0x200, scoped, tag = 'input window, operand 1, single buffered']
    #allocation3 [shape = 's32[1]{0}', space=sflag, size = 0x4, scoped, tag = 'scoped memory for tpu_custom_call.1']
    %8 = vsyncpa [#allocation3], 0
    // Predicated region
    $region2: #{tpu_custom_call.1} parent=1 // pred_check
      _
    $region3: #{tpu_custom_call.1} parent=1 // pred_check_branch
      %10 = sbr.rel (0) target = $region5
    $region4: #{tpu_custom_call.1} parent=1 // pred_region
      _
    $region5: #{tpu_custom_call.1} parent=1 // pred_fallthru
      _
    // Predicated region
    $region6: #{tpu_custom_call.1} parent=1 // pred_check
      _
    $region7: #{tpu_custom_call.1} parent=1 // pred_check_branch
      %12 = sbr.rel (0) target = $region9
    $region8: #{tpu_custom_call.1} parent=1 // pred_region
      %s14 = ssub.s32 16, 16
      %15 = vsyncadd [#allocation3], %s14
      %s17 = sshll.u32 %s1, 4
      %s18 = int_to_ptr.vmem [resolvable:$true] %s17
      %20 = dma.vmem_to_smem %s18, 16, [#allocation2], [#allocation3]
    $region9: #{tpu_custom_call.1} parent=1 // pred_fallthru
      _
    // Predicated region
    $region10: #{tpu_custom_call.1} parent=1 // pred_check
      _
    $region11: #{tpu_custom_call.1} parent=1 // pred_check_branch
      %22 = sbr.rel (0) target = $region13
    $region12: #{tpu_custom_call.1} parent=1 // pred_region
      _
    $region13: #{tpu_custom_call.1} parent=1 // pred_fallthru
      _
    // Predicated region
    $region14: #{tpu_custom_call.1} parent=1 // pred_check
      _
    $region15: #{tpu_custom_call.1} parent=1 // pred_check_branch
      %24 = sbr.rel (0) target = $region17
    $region16: #{tpu_custom_call.1} parent=1 // pred_region
      %25 = dma.done [#allocation3], 16
    $region17: #{tpu_custom_call.1} parent=1 // pred_fallthru
      _
    %26 = sfence
    %v27 = vld [vmem:[%s0] sm:$0xff]
    %v28 = vld [vmem:[%s0 + $0x8] sm:$0xff]
    %v29 = vld [vmem:[%s0 + $0x10] sm:$0xff]
    %v30 = vld [vmem:[%s0 + $0x18] sm:$0xff]
    %v31 = vld [vmem:[%s0 + $0x20] sm:$0xff]
    %v32 = vld [vmem:[%s0 + $0x28] sm:$0xff]
    %v33 = vld [vmem:[%s0 + $0x30] sm:$0xff]
    %v34 = vld [vmem:[%s0 + $0x38] sm:$0xff]
    %s35 = sld [smem:[#allocation2]]
    %v36 = vstv %s35
    %v37 = vmul.f32 %v27, %v36
    %v38 = vmul.f32 %v28, %v36
    %v39 = vmul.f32 %v29, %v36
    %v40 = vmul.f32 %v30, %v36
    %v41 = vmul.f32 %v31, %v36
    %v42 = vmul.f32 %v32, %v36
    %v43 = vmul.f32 %v33, %v36
    %v44 = vmul.f32 %v34, %v36
    %s45 = sld [smem:[#allocation2 + $0x1]]
    %v46 = vstv %s45
    %v47 = vmul.f32 %v27, %v46
    %v48 = vmul.f32 %v28, %v46
    %v49 = vmul.f32 %v29, %v46
    %v50 = vmul.f32 %v30, %v46
    %v51 = vmul.f32 %v31, %v46
    %v52 = vmul.f32 %v32, %v46
    %v53 = vmul.f32 %v33, %v46
    %v54 = vmul.f32 %v34, %v46
    %63 = vrot.lane.b32.xlu0 %v47, 127
    %v64 = vpop.permute.xlu0 %63
    %65 = vrot.lane.b32.xlu0 %v48, 127
    %v66 = vpop.permute.xlu0 %65
    %67 = vrot.lane.b32.xlu0 %v49, 127
    %v68 = vpop.permute.xlu0 %67
    %69 = vrot.lane.b32.xlu0 %v50, 127
    %v70 = vpop.permute.xlu0 %69
    %71 = vrot.lane.b32.xlu0 %v51, 127
    %v72 = vpop.permute.xlu0 %71
    %73 = vrot.lane.b32.xlu0 %v52, 127
    %v74 = vpop.permute.xlu0 %73
    %75 = vrot.lane.b32.xlu0 %v53, 127
    %v76 = vpop.permute.xlu0 %75
    %77 = vrot.lane.b32.xlu0 %v54, 127
    %v78 = vpop.permute.xlu0 %77
    %v87 = vadd.f32 %v37, %v64
    %v88 = vadd.f32 %v38, %v66
    %v89 = vadd.f32 %v39, %v68
    %v90 = vadd.f32 %v40, %v70
    %v91 = vadd.f32 %v41, %v72
    %v92 = vadd.f32 %v42, %v74
    %v93 = vadd.f32 %v43, %v76
    %v94 = vadd.f32 %v44, %v78
    %s95 = sld [smem:[#allocation2 + $0x2]]
    %v96 = vstv %s95
    %v97 = vmul.f32 %v27, %v96
    %v98 = vmul.f32 %v28, %v96
    %v99 = vmul.f32 %v29, %v96
    %v100 = vmul.f32 %v30, %v96
    %v101 = vmul.f32 %v31, %v96
    %v102 = vmul.f32 %v32, %v96
    %v103 = vmul.f32 %v33, %v96
    %v104 = vmul.f32 %v34, %v96
    %113 = vrot.lane.b32.xlu0 %v97, 126
    %v114 = vpop.permute.xlu0 %113
    %115 = vrot.lane.b32.xlu0 %v98, 126
    %v116 = vpop.permute.xlu0 %115
    %117 = vrot.lane.b32.xlu0 %v99, 126
    %v118 = vpop.permute.xlu0 %117
    %119 = vrot.lane.b32.xlu0 %v100, 126
    %v120 = vpop.permute.xlu0 %119
    %121 = vrot.lane.b32.xlu0 %v101, 126
    %v122 = vpop.permute.xlu0 %121
    %123 = vrot.lane.b32.xlu0 %v102, 126
    %v124 = vpop.permute.xlu0 %123
    %125 = vrot.lane.b32.xlu0 %v103, 126
    %v126 = vpop.permute.xlu0 %125
    %127 = vrot.lane.b32.xlu0 %v104, 126
    %v128 = vpop.permute.xlu0 %127
    %v137 = vadd.f32 %v87, %v114
    %v138 = vadd.f32 %v88, %v116
    %v139 = vadd.f32 %v89, %v118
    %v140 = vadd.f32 %v90, %v120
    %v141 = vadd.f32 %v91, %v122
    %v142 = vadd.f32 %v92, %v124
    %v143 = vadd.f32 %v93, %v126
    %v144 = vadd.f32 %v94, %v128
    %s145 = sld [smem:[#allocation2 + $0x3]]
    %v146 = vstv %s145
    %v147 = vmul.f32 %v27, %v146
    %v148 = vmul.f32 %v28, %v146
    %v149 = vmul.f32 %v29, %v146
    %v150 = vmul.f32 %v30, %v146
    %v151 = vmul.f32 %v31, %v146
    %v152 = vmul.f32 %v32, %v146
    %v153 = vmul.f32 %v33, %v146
    %v154 = vmul.f32 %v34, %v146
    %163 = vrot.lane.b32.xlu0 %v147, 125
    %v164 = vpop.permute.xlu0 %163
    %165 = vrot.lane.b32.xlu0 %v148, 125
    %v166 = vpop.permute.xlu0 %165
    %167 = vrot.lane.b32.xlu0 %v149, 125
    %v168 = vpop.permute.xlu0 %167
    %169 = vrot.lane.b32.xlu0 %v150, 125
    %v170 = vpop.permute.xlu0 %169
    %171 = vrot.lane.b32.xlu0 %v151, 125
    %v172 = vpop.permute.xlu0 %171
    %173 = vrot.lane.b32.xlu0 %v152, 125
    %v174 = vpop.permute.xlu0 %173
    %175 = vrot.lane.b32.xlu0 %v153, 125
    %v176 = vpop.permute.xlu0 %175
    %177 = vrot.lane.b32.xlu0 %v154, 125
    %v178 = vpop.permute.xlu0 %177
    %v187 = vadd.f32 %v137, %v164
    %v188 = vadd.f32 %v138, %v166
    %v189 = vadd.f32 %v139, %v168
    %v190 = vadd.f32 %v140, %v170
    %v191 = vadd.f32 %v141, %v172
    %v192 = vadd.f32 %v142, %v174
    %v193 = vadd.f32 %v143, %v176
    %v194 = vadd.f32 %v144, %v178
    %s195 = sld [smem:[#allocation2 + $0x4]]
    %v196 = vstv %s195
    %v197 = vmul.f32 %v27, %v196
    %v198 = vmul.f32 %v28, %v196
    %v199 = vmul.f32 %v29, %v196
    %v200 = vmul.f32 %v30, %v196
    %v201 = vmul.f32 %v31, %v196
    %v202 = vmul.f32 %v32, %v196
    %v203 = vmul.f32 %v33, %v196
    %v204 = vmul.f32 %v34, %v196
    %213 = vrot.lane.b32.xlu0 %v197, 124
    %v214 = vpop.permute.xlu0 %213
    %215 = vrot.lane.b32.xlu0 %v198, 124
    %v216 = vpop.permute.xlu0 %215
    %217 = vrot.lane.b32.xlu0 %v199, 124
    %v218 = vpop.permute.xlu0 %217
    %219 = vrot.lane.b32.xlu0 %v200, 124
    %v220 = vpop.permute.xlu0 %219
    %221 = vrot.lane.b32.xlu0 %v201, 124
    %v222 = vpop.permute.xlu0 %221
    %223 = vrot.lane.b32.xlu0 %v202, 124
    %v224 = vpop.permute.xlu0 %223
    %225 = vrot.lane.b32.xlu0 %v203, 124
    %v226 = vpop.permute.xlu0 %225
    %227 = vrot.lane.b32.xlu0 %v204, 124
    %v228 = vpop.permute.xlu0 %227
    %v237 = vadd.f32 %v187, %v214
    %v238 = vadd.f32 %v188, %v216
    %v239 = vadd.f32 %v189, %v218
    %v240 = vadd.f32 %v190, %v220
    %v241 = vadd.f32 %v191, %v222
    %v242 = vadd.f32 %v192, %v224
    %v243 = vadd.f32 %v193, %v226
    %v244 = vadd.f32 %v194, %v228
    %s245 = sld [smem:[#allocation2 + $0xe]]
    %v246 = vstv %s245
    %v247 = vadd.f32 %v237, %v246
    %v248 = vadd.f32 %v238, %v246
    %v249 = vadd.f32 %v239, %v246
    %v250 = vadd.f32 %v240, %v246
    %v251 = vadd.f32 %v241, %v246
    %v252 = vadd.f32 %v242, %v246
    %v253 = vadd.f32 %v243, %v246
    %v254 = vadd.f32 %v244, %v246
    %s255 = sld [smem:[#allocation2 + $0x5]]
    %v256 = vstv %s255
    %v257 = vmul.f32 %v27, %v256
    %v258 = vmul.f32 %v28, %v256
    %v259 = vmul.f32 %v29, %v256
    %v260 = vmul.f32 %v30, %v256
    %v261 = vmul.f32 %v31, %v256
    %v262 = vmul.f32 %v32, %v256
    %v263 = vmul.f32 %v33, %v256
    %v264 = vmul.f32 %v34, %v256
    %s265 = sld [smem:[#allocation2 + $0x6]]
    %v266 = vstv %s265
    %v267 = vmul.f32 %v27, %v266
    %v268 = vmul.f32 %v28, %v266
    %v269 = vmul.f32 %v29, %v266
    %v270 = vmul.f32 %v30, %v266
    %v271 = vmul.f32 %v31, %v266
    %v272 = vmul.f32 %v32, %v266
    %v273 = vmul.f32 %v33, %v266
    %v274 = vmul.f32 %v34, %v266
    %283 = vrot.lane.b32.xlu0 %v267, 127
    %v284 = vpop.permute.xlu0 %283
    %285 = vrot.lane.b32.xlu0 %v268, 127
    %v286 = vpop.permute.xlu0 %285
    %287 = vrot.lane.b32.xlu0 %v269, 127
    %v288 = vpop.permute.xlu0 %287
    %289 = vrot.lane.b32.xlu0 %v270, 127
    %v290 = vpop.permute.xlu0 %289
    %291 = vrot.lane.b32.xlu0 %v271, 127
    %v292 = vpop.permute.xlu0 %291
    %293 = vrot.lane.b32.xlu0 %v272, 127
    %v294 = vpop.permute.xlu0 %293
    %295 = vrot.lane.b32.xlu0 %v273, 127
    %v296 = vpop.permute.xlu0 %295
    %297 = vrot.lane.b32.xlu0 %v274, 127
    %v298 = vpop.permute.xlu0 %297
    %v307 = vadd.f32 %v257, %v284
    %v308 = vadd.f32 %v258, %v286
    %v309 = vadd.f32 %v259, %v288
    %v310 = vadd.f32 %v260, %v290
    %v311 = vadd.f32 %v261, %v292
    %v312 = vadd.f32 %v262, %v294
    %v313 = vadd.f32 %v263, %v296
    %v314 = vadd.f32 %v264, %v298
    %s315 = sld [smem:[#allocation2 + $0x7]]
    %v316 = vstv %s315
    %v317 = vmul.f32 %v27, %v316
    %v318 = vmul.f32 %v28, %v316
    %v319 = vmul.f32 %v29, %v316
    %v320 = vmul.f32 %v30, %v316
    %v321 = vmul.f32 %v31, %v316
    %v322 = vmul.f32 %v32, %v316
    %v323 = vmul.f32 %v33, %v316
    %v324 = vmul.f32 %v34, %v316
    %333 = vrot.lane.b32.xlu0 %v317, 126
    %v334 = vpop.permute.xlu0 %333
    %335 = vrot.lane.b32.xlu0 %v318, 126
    %v336 = vpop.permute.xlu0 %335
    %337 = vrot.lane.b32.xlu0 %v319, 126
    %v338 = vpop.permute.xlu0 %337
    %339 = vrot.lane.b32.xlu0 %v320, 126
    %v340 = vpop.permute.xlu0 %339
    %341 = vrot.lane.b32.xlu0 %v321, 126
    %v342 = vpop.permute.xlu0 %341
    %343 = vrot.lane.b32.xlu0 %v322, 126
    %v344 = vpop.permute.xlu0 %343
    %345 = vrot.lane.b32.xlu0 %v323, 126
    %v346 = vpop.permute.xlu0 %345
    %347 = vrot.lane.b32.xlu0 %v324, 126
    %v348 = vpop.permute.xlu0 %347
    %v357 = vadd.f32 %v307, %v334
    %v358 = vadd.f32 %v308, %v336
    %v359 = vadd.f32 %v309, %v338
    %v360 = vadd.f32 %v310, %v340
    %v361 = vadd.f32 %v311, %v342
    %v362 = vadd.f32 %v312, %v344
    %v363 = vadd.f32 %v313, %v346
    %v364 = vadd.f32 %v314, %v348
    %s365 = sld [smem:[#allocation2 + $0x8]]
    %v366 = vstv %s365
    %v367 = vmul.f32 %v27, %v366
    %v368 = vmul.f32 %v28, %v366
    %v369 = vmul.f32 %v29, %v366
    %v370 = vmul.f32 %v30, %v366
    %v371 = vmul.f32 %v31, %v366
    %v372 = vmul.f32 %v32, %v366
    %v373 = vmul.f32 %v33, %v366
    %v374 = vmul.f32 %v34, %v366
    %383 = vrot.lane.b32.xlu0 %v367, 125
    %v384 = vpop.permute.xlu0 %383
    %385 = vrot.lane.b32.xlu0 %v368, 125
    %v386 = vpop.permute.xlu0 %385
    %387 = vrot.lane.b32.xlu0 %v369, 125
    %v388 = vpop.permute.xlu0 %387
    %389 = vrot.lane.b32.xlu0 %v370, 125
    %v390 = vpop.permute.xlu0 %389
    %391 = vrot.lane.b32.xlu0 %v371, 125
    %v392 = vpop.permute.xlu0 %391
    %393 = vrot.lane.b32.xlu0 %v372, 125
    %v394 = vpop.permute.xlu0 %393
    %395 = vrot.lane.b32.xlu0 %v373, 125
    %v396 = vpop.permute.xlu0 %395
    %397 = vrot.lane.b32.xlu0 %v374, 125
    %v398 = vpop.permute.xlu0 %397
    %v407 = vadd.f32 %v357, %v384
    %v408 = vadd.f32 %v358, %v386
    %v409 = vadd.f32 %v359, %v388
    %v410 = vadd.f32 %v360, %v390
    %v411 = vadd.f32 %v361, %v392
    %v412 = vadd.f32 %v362, %v394
    %v413 = vadd.f32 %v363, %v396
    %v414 = vadd.f32 %v364, %v398
    %s415 = sld [smem:[#allocation2 + $0x9]]
    %v416 = vstv %s415
    %v417 = vmul.f32 %v27, %v416
    %v418 = vmul.f32 %v28, %v416
    %v419 = vmul.f32 %v29, %v416
    %v420 = vmul.f32 %v30, %v416
    %v421 = vmul.f32 %v31, %v416
    %v422 = vmul.f32 %v32, %v416
    %v423 = vmul.f32 %v33, %v416
    %v424 = vmul.f32 %v34, %v416
    %433 = vrot.lane.b32.xlu0 %v417, 124
    %v434 = vpop.permute.xlu0 %433
    %435 = vrot.lane.b32.xlu0 %v418, 124
    %v436 = vpop.permute.xlu0 %435
    %437 = vrot.lane.b32.xlu0 %v419, 124
    %v438 = vpop.permute.xlu0 %437
    %439 = vrot.lane.b32.xlu0 %v420, 124
    %v440 = vpop.permute.xlu0 %439
    %441 = vrot.lane.b32.xlu0 %v421, 124
    %v442 = vpop.permute.xlu0 %441
    %443 = vrot.lane.b32.xlu0 %v422, 124
    %v444 = vpop.permute.xlu0 %443
    %445 = vrot.lane.b32.xlu0 %v423, 124
    %v446 = vpop.permute.xlu0 %445
    %447 = vrot.lane.b32.xlu0 %v424, 124
    %v448 = vpop.permute.xlu0 %447
    %v457 = vadd.f32 %v407, %v434
    %v458 = vadd.f32 %v408, %v436
    %v459 = vadd.f32 %v409, %v438
    %v460 = vadd.f32 %v410, %v440
    %v461 = vadd.f32 %v411, %v442
    %v462 = vadd.f32 %v412, %v444
    %v463 = vadd.f32 %v413, %v446
    %v464 = vadd.f32 %v414, %v448
    %s465 = sld [smem:[#allocation2 + $0xf]]
    %v466 = vstv %s465
    %v467 = vadd.f32 %v457, %v466
    %v468 = vadd.f32 %v458, %v466
    %v469 = vadd.f32 %v459, %v466
    %v470 = vadd.f32 %v460, %v466
    %v471 = vadd.f32 %v461, %v466
    %v472 = vadd.f32 %v462, %v466
    %v473 = vadd.f32 %v463, %v466
    %v474 = vadd.f32 %v464, %v466
    %s475 = sld [smem:[#allocation2 + $0xa]]
    %v476 = vstv %s475
    %v477 = vmul.f32 %v476, 0.0
    %v478 = vadd.f32 %v247, %v477
    %v479 = vadd.f32 %v248, %v477
    %v480 = vadd.f32 %v249, %v477
    %v481 = vadd.f32 %v250, %v477
    %v482 = vadd.f32 %v251, %v477
    %v483 = vadd.f32 %v252, %v477
    %v484 = vadd.f32 %v253, %v477
    %v485 = vadd.f32 %v254, %v477
    %s486 = sld [smem:[#allocation2 + $0xb]]
    %v487 = vstv %s486
    %v488 = vmul.f32 %v487, 0.0
    %v489 = vadd.f32 %v478, %v488
    %v490 = vadd.f32 %v479, %v488
    %v491 = vadd.f32 %v480, %v488
    %v492 = vadd.f32 %v481, %v488
    %v493 = vadd.f32 %v482, %v488
    %v494 = vadd.f32 %v483, %v488
    %v495 = vadd.f32 %v484, %v488
    %v496 = vadd.f32 %v485, %v488
    %s497 = sld [smem:[#allocation2 + $0xc]]
    %v498 = vstv %s497
    %v499 = vmul.f32 %v498, 0.0
    %v500 = vadd.f32 %v467, %v499
    %v501 = vadd.f32 %v468, %v499
    %v502 = vadd.f32 %v469, %v499
    %v503 = vadd.f32 %v470, %v499
    %v504 = vadd.f32 %v471, %v499
    %v505 = vadd.f32 %v472, %v499
    %v506 = vadd.f32 %v473, %v499
    %v507 = vadd.f32 %v474, %v499
    %s508 = sld [smem:[#allocation2 + $0xd]]
    %v509 = vstv %s508
    %v510 = vmul.f32 %v509, 0.0
    %v511 = vadd.f32 %v500, %v510
    %v512 = vadd.f32 %v501, %v510
    %v513 = vadd.f32 %v502, %v510
    %v514 = vadd.f32 %v503, %v510
    %v515 = vadd.f32 %v504, %v510
    %v516 = vadd.f32 %v505, %v510
    %v517 = vadd.f32 %v506, %v510
    %v518 = vadd.f32 %v507, %v510
    %v519 = vtanh.pop %v489
    %v520 = vtanh.pop %v490
    %v521 = vtanh.pop %v491
    %v522 = vtanh.pop %v492
    %v523 = vtanh.pop %v493
    %v524 = vtanh.pop %v494
    %v525 = vtanh.pop %v495
    %v526 = vtanh.pop %v496
    %v527 = vtanh.pop %v511
    %v528 = vtanh.pop %v512
    %v529 = vtanh.pop %v513
    %v530 = vtanh.pop %v514
    %v531 = vtanh.pop %v515
    %v532 = vtanh.pop %v516
    %v533 = vtanh.pop %v517
    %v534 = vtanh.pop %v518
    %v535 = vmul.f32 %v519, %v476
    %v536 = vmul.f32 %v520, %v476
    %v537 = vmul.f32 %v521, %v476
    %v538 = vmul.f32 %v522, %v476
    %v539 = vmul.f32 %v523, %v476
    %v540 = vmul.f32 %v524, %v476
    %v541 = vmul.f32 %v525, %v476
    %v542 = vmul.f32 %v526, %v476
    %v551 = vrot.slane %v535, 7
    %v552 = vrot.slane %v536, 7
    %v553 = vrot.slane %v537, 7
    %v554 = vrot.slane %v538, 7
    %v555 = vrot.slane %v539, 7
    %v556 = vrot.slane %v540, 7
    %v557 = vrot.slane %v541, 7
    %v558 = vrot.slane %v542, 7
    %v567 = vadd.f32 %v247, %v551
    %v568 = vadd.f32 %v248, %v552
    %v569 = vadd.f32 %v249, %v553
    %v570 = vadd.f32 %v250, %v554
    %v571 = vadd.f32 %v251, %v555
    %v572 = vadd.f32 %v252, %v556
    %v573 = vadd.f32 %v253, %v557
    %v574 = vadd.f32 %v254, %v558
    %v575 = vmul.f32 %v527, %v487
    %v576 = vmul.f32 %v528, %v487
    %v577 = vmul.f32 %v529, %v487
    %v578 = vmul.f32 %v530, %v487
    %v579 = vmul.f32 %v531, %v487
    %v580 = vmul.f32 %v532, %v487
    %v581 = vmul.f32 %v533, %v487
    %v582 = vmul.f32 %v534, %v487
    %v591 = vrot.slane %v575, 7
    %v592 = vrot.slane %v576, 7
    %v593 = vrot.slane %v577, 7
    %v594 = vrot.slane %v578, 7
    %v595 = vrot.slane %v579, 7
    %v596 = vrot.slane %v580, 7
    %v597 = vrot.slane %v581, 7
    %v598 = vrot.slane %v582, 7
    %v607 = vadd.f32 %v567, %v591
    %v608 = vadd.f32 %v568, %v592
    %v609 = vadd.f32 %v569, %v593
    %v610 = vadd.f32 %v570, %v594
    %v611 = vadd.f32 %v571, %v595
    %v612 = vadd.f32 %v572, %v596
    %v613 = vadd.f32 %v573, %v597
    %v614 = vadd.f32 %v574, %v598
    %v615 = vmul.f32 %v519, %v498
    %v616 = vmul.f32 %v520, %v498
    %v617 = vmul.f32 %v521, %v498
    %v618 = vmul.f32 %v522, %v498
    %v619 = vmul.f32 %v523, %v498
    %v620 = vmul.f32 %v524, %v498
    %v621 = vmul.f32 %v525, %v498
    %v622 = vmul.f32 %v526, %v498
    %v631 = vrot.slane %v615, 7
    %v632 = vrot.slane %v616, 7
    %v633 = vrot.slane %v617, 7
    %v634 = vrot.slane %v618, 7
    %v635 = vrot.slane %v619, 7
    %v636 = vrot.slane %v620, 7
    %v637 = vrot.slane %v621, 7
    %v638 = vrot.slane %v622, 7
    %v647 = vadd.f32 %v467, %v631
    %v648 = vadd.f32 %v468, %v632
    %v649 = vadd.f32 %v469, %v633
    %v650 = vadd.f32 %v470, %v634
    %v651 = vadd.f32 %v471, %v635
    %v652 = vadd.f32 %v472, %v636
    %v653 = vadd.f32 %v473, %v637
    %v654 = vadd.f32 %v474, %v638
    %v655 = vmul.f32 %v527, %v509
    %v656 = vmul.f32 %v528, %v509
    %v657 = vmul.f32 %v529, %v509
    %v658 = vmul.f32 %v530, %v509
    %v659 = vmul.f32 %v531, %v509
    %v660 = vmul.f32 %v532, %v509
    %v661 = vmul.f32 %v533, %v509
    %v662 = vmul.f32 %v534, %v509
    %v671 = vrot.slane %v655, 7
    %v672 = vrot.slane %v656, 7
    %v673 = vrot.slane %v657, 7
    %v674 = vrot.slane %v658, 7
    %v675 = vrot.slane %v659, 7
    %v676 = vrot.slane %v660, 7
    %v677 = vrot.slane %v661, 7
    %v678 = vrot.slane %v662, 7
    %v687 = vadd.f32 %v647, %v671
    %v688 = vadd.f32 %v648, %v672
    %v689 = vadd.f32 %v649, %v673
    %v690 = vadd.f32 %v650, %v674
    %v691 = vadd.f32 %v651, %v675
    %v692 = vadd.f32 %v652, %v676
    %v693 = vadd.f32 %v653, %v677
    %v694 = vadd.f32 %v654, %v678
    %v695 = vtanh.pop %v607
    %v696 = vtanh.pop %v608
    %v697 = vtanh.pop %v609
    %v698 = vtanh.pop %v610
    %v699 = vtanh.pop %v611
    %v700 = vtanh.pop %v612
    %v701 = vtanh.pop %v613
    %v702 = vtanh.pop %v614
    %v703 = vtanh.pop %v687
    %v704 = vtanh.pop %v688
    %v705 = vtanh.pop %v689
    %v706 = vtanh.pop %v690
    %v707 = vtanh.pop %v691
    %v708 = vtanh.pop %v692
    %v709 = vtanh.pop %v693
    %v710 = vtanh.pop %v694
    %v711 = vmul.f32 %v695, %v476
    %v712 = vmul.f32 %v696, %v476
    %v713 = vmul.f32 %v697, %v476
    %v714 = vmul.f32 %v698, %v476
    %v715 = vmul.f32 %v699, %v476
    %v716 = vmul.f32 %v700, %v476
    %v717 = vmul.f32 %v701, %v476
    %v718 = vmul.f32 %v702, %v476
    %v727 = vrot.slane %v711, 7
    %v728 = vrot.slane %v712, 7
    %v729 = vrot.slane %v713, 7
    %v730 = vrot.slane %v714, 7
    %v731 = vrot.slane %v715, 7
    %v732 = vrot.slane %v716, 7
    %v733 = vrot.slane %v717, 7
    %v734 = vrot.slane %v718, 7
    %v743 = vadd.f32 %v247, %v727
    %v744 = vadd.f32 %v248, %v728
    %v745 = vadd.f32 %v249, %v729
    %v746 = vadd.f32 %v250, %v730
    %v747 = vadd.f32 %v251, %v731
    %v748 = vadd.f32 %v252, %v732
    %v749 = vadd.f32 %v253, %v733
    %v750 = vadd.f32 %v254, %v734
    %v751 = vmul.f32 %v703, %v487
    %v752 = vmul.f32 %v704, %v487
    %v753 = vmul.f32 %v705, %v487
    %v754 = vmul.f32 %v706, %v487
    %v755 = vmul.f32 %v707, %v487
    %v756 = vmul.f32 %v708, %v487
    %v757 = vmul.f32 %v709, %v487
    %v758 = vmul.f32 %v710, %v487
    %v767 = vrot.slane %v751, 7
    %v768 = vrot.slane %v752, 7
    %v769 = vrot.slane %v753, 7
    %v770 = vrot.slane %v754, 7
    %v771 = vrot.slane %v755, 7
    %v772 = vrot.slane %v756, 7
    %v773 = vrot.slane %v757, 7
    %v774 = vrot.slane %v758, 7
    %v783 = vadd.f32 %v743, %v767
    %v784 = vadd.f32 %v744, %v768
    %v785 = vadd.f32 %v745, %v769
    %v786 = vadd.f32 %v746, %v770
    %v787 = vadd.f32 %v747, %v771
    %v788 = vadd.f32 %v748, %v772
    %v789 = vadd.f32 %v749, %v773
    %v790 = vadd.f32 %v750, %v774
    %v791 = vmul.f32 %v695, %v498
    %v792 = vmul.f32 %v696, %v498
    %v793 = vmul.f32 %v697, %v498
    %v794 = vmul.f32 %v698, %v498
    %v795 = vmul.f32 %v699, %v498
    %v796 = vmul.f32 %v700, %v498
    %v797 = vmul.f32 %v701, %v498
    %v798 = vmul.f32 %v702, %v498
    %v807 = vrot.slane %v791, 7
    %v808 = vrot.slane %v792, 7
    %v809 = vrot.slane %v793, 7
    %v810 = vrot.slane %v794, 7
    %v811 = vrot.slane %v795, 7
    %v812 = vrot.slane %v796, 7
    %v813 = vrot.slane %v797, 7
    %v814 = vrot.slane %v798, 7
    %v823 = vadd.f32 %v467, %v807
    %v824 = vadd.f32 %v468, %v808
    %v825 = vadd.f32 %v469, %v809
    %v826 = vadd.f32 %v470, %v810
    %v827 = vadd.f32 %v471, %v811
    %v828 = vadd.f32 %v472, %v812
    %v829 = vadd.f32 %v473, %v813
    %v830 = vadd.f32 %v474, %v814
    %v831 = vmul.f32 %v703, %v509
    %v832 = vmul.f32 %v704, %v509
    %v833 = vmul.f32 %v705, %v509
    %v834 = vmul.f32 %v706, %v509
    %v835 = vmul.f32 %v707, %v509
    %v836 = vmul.f32 %v708, %v509
    %v837 = vmul.f32 %v709, %v509
    %v838 = vmul.f32 %v710, %v509
    %v847 = vrot.slane %v831, 7
    %v848 = vrot.slane %v832, 7
    %v849 = vrot.slane %v833, 7
    %v850 = vrot.slane %v834, 7
    %v851 = vrot.slane %v835, 7
    %v852 = vrot.slane %v836, 7
    %v853 = vrot.slane %v837, 7
    %v854 = vrot.slane %v838, 7
    %v863 = vadd.f32 %v823, %v847
    %v864 = vadd.f32 %v824, %v848
    %v865 = vadd.f32 %v825, %v849
    %v866 = vadd.f32 %v826, %v850
    %v867 = vadd.f32 %v827, %v851
    %v868 = vadd.f32 %v828, %v852
    %v869 = vadd.f32 %v829, %v853
    %v870 = vadd.f32 %v830, %v854
    %v871 = vtanh.pop %v783
    %v872 = vtanh.pop %v784
    %v873 = vtanh.pop %v785
    %v874 = vtanh.pop %v786
    %v875 = vtanh.pop %v787
    %v876 = vtanh.pop %v788
    %v877 = vtanh.pop %v789
    %v878 = vtanh.pop %v790
    %v879 = vtanh.pop %v863
    %v880 = vtanh.pop %v864
    %v881 = vtanh.pop %v865
    %v882 = vtanh.pop %v866
    %v883 = vtanh.pop %v867
    %v884 = vtanh.pop %v868
    %v885 = vtanh.pop %v869
    %v886 = vtanh.pop %v870
    %v887 = vmul.f32 %v871, %v476
    %v888 = vmul.f32 %v872, %v476
    %v889 = vmul.f32 %v873, %v476
    %v890 = vmul.f32 %v874, %v476
    %v891 = vmul.f32 %v875, %v476
    %v892 = vmul.f32 %v876, %v476
    %v893 = vmul.f32 %v877, %v476
    %v894 = vmul.f32 %v878, %v476
    %v903 = vrot.slane %v887, 7
    %v904 = vrot.slane %v888, 7
    %v905 = vrot.slane %v889, 7
    %v906 = vrot.slane %v890, 7
    %v907 = vrot.slane %v891, 7
    %v908 = vrot.slane %v892, 7
    %v909 = vrot.slane %v893, 7
    %v910 = vrot.slane %v894, 7
    %v919 = vadd.f32 %v247, %v903
    %v920 = vadd.f32 %v248, %v904
    %v921 = vadd.f32 %v249, %v905
    %v922 = vadd.f32 %v250, %v906
    %v923 = vadd.f32 %v251, %v907
    %v924 = vadd.f32 %v252, %v908
    %v925 = vadd.f32 %v253, %v909
    %v926 = vadd.f32 %v254, %v910
    %v927 = vmul.f32 %v879, %v487
    %v928 = vmul.f32 %v880, %v487
    %v929 = vmul.f32 %v881, %v487
    %v930 = vmul.f32 %v882, %v487
    %v931 = vmul.f32 %v883, %v487
    %v932 = vmul.f32 %v884, %v487
    %v933 = vmul.f32 %v885, %v487
    %v934 = vmul.f32 %v886, %v487
    %v943 = vrot.slane %v927, 7
    %v944 = vrot.slane %v928, 7
    %v945 = vrot.slane %v929, 7
    %v946 = vrot.slane %v930, 7
    %v947 = vrot.slane %v931, 7
    %v948 = vrot.slane %v932, 7
    %v949 = vrot.slane %v933, 7
    %v950 = vrot.slane %v934, 7
    %v959 = vadd.f32 %v919, %v943
    %v960 = vadd.f32 %v920, %v944
    %v961 = vadd.f32 %v921, %v945
    %v962 = vadd.f32 %v922, %v946
    %v963 = vadd.f32 %v923, %v947
    %v964 = vadd.f32 %v924, %v948
    %v965 = vadd.f32 %v925, %v949
    %v966 = vadd.f32 %v926, %v950
    %v967 = vmul.f32 %v871, %v498
    %v968 = vmul.f32 %v872, %v498
    %v969 = vmul.f32 %v873, %v498
    %v970 = vmul.f32 %v874, %v498
    %v971 = vmul.f32 %v875, %v498
    %v972 = vmul.f32 %v876, %v498
    %v973 = vmul.f32 %v877, %v498
    %v974 = vmul.f32 %v878, %v498
    %v983 = vrot.slane %v967, 7
    %v984 = vrot.slane %v968, 7
    %v985 = vrot.slane %v969, 7
    %v986 = vrot.slane %v970, 7
    %v987 = vrot.slane %v971, 7
    %v988 = vrot.slane %v972, 7
    %v989 = vrot.slane %v973, 7
    %v990 = vrot.slane %v974, 7
    %v999 = vadd.f32 %v467, %v983
    %v1000 = vadd.f32 %v468, %v984
    %v1001 = vadd.f32 %v469, %v985
    %v1002 = vadd.f32 %v470, %v986
    %v1003 = vadd.f32 %v471, %v987
    %v1004 = vadd.f32 %v472, %v988
    %v1005 = vadd.f32 %v473, %v989
    %v1006 = vadd.f32 %v474, %v990
    %v1007 = vmul.f32 %v879, %v509
    %v1008 = vmul.f32 %v880, %v509
    %v1009 = vmul.f32 %v881, %v509
    %v1010 = vmul.f32 %v882, %v509
    %v1011 = vmul.f32 %v883, %v509
    %v1012 = vmul.f32 %v884, %v509
    %v1013 = vmul.f32 %v885, %v509
    %v1014 = vmul.f32 %v886, %v509
    %v1023 = vrot.slane %v1007, 7
    %v1024 = vrot.slane %v1008, 7
    %v1025 = vrot.slane %v1009, 7
    %v1026 = vrot.slane %v1010, 7
    %v1027 = vrot.slane %v1011, 7
    %v1028 = vrot.slane %v1012, 7
    %v1029 = vrot.slane %v1013, 7
    %v1030 = vrot.slane %v1014, 7
    %v1039 = vadd.f32 %v999, %v1023
    %v1040 = vadd.f32 %v1000, %v1024
    %v1041 = vadd.f32 %v1001, %v1025
    %v1042 = vadd.f32 %v1002, %v1026
    %v1043 = vadd.f32 %v1003, %v1027
    %v1044 = vadd.f32 %v1004, %v1028
    %v1045 = vadd.f32 %v1005, %v1029
    %v1046 = vadd.f32 %v1006, %v1030
    %v1047 = vtanh.pop %v959
    %v1048 = vtanh.pop %v960
    %v1049 = vtanh.pop %v961
    %v1050 = vtanh.pop %v962
    %v1051 = vtanh.pop %v963
    %v1052 = vtanh.pop %v964
    %v1053 = vtanh.pop %v965
    %v1054 = vtanh.pop %v966
    %v1055 = vtanh.pop %v1039
    %v1056 = vtanh.pop %v1040
    %v1057 = vtanh.pop %v1041
    %v1058 = vtanh.pop %v1042
    %v1059 = vtanh.pop %v1043
    %v1060 = vtanh.pop %v1044
    %v1061 = vtanh.pop %v1045
    %v1062 = vtanh.pop %v1046
    %v1063 = vmul.f32 %v1047, %v476
    %v1064 = vmul.f32 %v1048, %v476
    %v1065 = vmul.f32 %v1049, %v476
    %v1066 = vmul.f32 %v1050, %v476
    %v1067 = vmul.f32 %v1051, %v476
    %v1068 = vmul.f32 %v1052, %v476
    %v1069 = vmul.f32 %v1053, %v476
    %v1070 = vmul.f32 %v1054, %v476
    %v1079 = vrot.slane %v1063, 7
    %v1080 = vrot.slane %v1064, 7
    %v1081 = vrot.slane %v1065, 7
    %v1082 = vrot.slane %v1066, 7
    %v1083 = vrot.slane %v1067, 7
    %v1084 = vrot.slane %v1068, 7
    %v1085 = vrot.slane %v1069, 7
    %v1086 = vrot.slane %v1070, 7
    %v1095 = vadd.f32 %v247, %v1079
    %v1096 = vadd.f32 %v248, %v1080
    %v1097 = vadd.f32 %v249, %v1081
    %v1098 = vadd.f32 %v250, %v1082
    %v1099 = vadd.f32 %v251, %v1083
    %v1100 = vadd.f32 %v252, %v1084
    %v1101 = vadd.f32 %v253, %v1085
    %v1102 = vadd.f32 %v254, %v1086
    %v1103 = vmul.f32 %v1055, %v487
    %v1104 = vmul.f32 %v1056, %v487
    %v1105 = vmul.f32 %v1057, %v487
    %v1106 = vmul.f32 %v1058, %v487
    %v1107 = vmul.f32 %v1059, %v487
    %v1108 = vmul.f32 %v1060, %v487
    %v1109 = vmul.f32 %v1061, %v487
    %v1110 = vmul.f32 %v1062, %v487
    %v1119 = vrot.slane %v1103, 7
    %v1120 = vrot.slane %v1104, 7
    %v1121 = vrot.slane %v1105, 7
    %v1122 = vrot.slane %v1106, 7
    %v1123 = vrot.slane %v1107, 7
    %v1124 = vrot.slane %v1108, 7
    %v1125 = vrot.slane %v1109, 7
    %v1126 = vrot.slane %v1110, 7
    %v1135 = vadd.f32 %v1095, %v1119
    %v1136 = vadd.f32 %v1096, %v1120
    %v1137 = vadd.f32 %v1097, %v1121
    %v1138 = vadd.f32 %v1098, %v1122
    %v1139 = vadd.f32 %v1099, %v1123
    %v1140 = vadd.f32 %v1100, %v1124
    %v1141 = vadd.f32 %v1101, %v1125
    %v1142 = vadd.f32 %v1102, %v1126
    %v1143 = vmul.f32 %v1047, %v498
    %v1144 = vmul.f32 %v1048, %v498
    %v1145 = vmul.f32 %v1049, %v498
    %v1146 = vmul.f32 %v1050, %v498
    %v1147 = vmul.f32 %v1051, %v498
    %v1148 = vmul.f32 %v1052, %v498
    %v1149 = vmul.f32 %v1053, %v498
    %v1150 = vmul.f32 %v1054, %v498
    %v1159 = vrot.slane %v1143, 7
    %v1160 = vrot.slane %v1144, 7
    %v1161 = vrot.slane %v1145, 7
    %v1162 = vrot.slane %v1146, 7
    %v1163 = vrot.slane %v1147, 7
    %v1164 = vrot.slane %v1148, 7
    %v1165 = vrot.slane %v1149, 7
    %v1166 = vrot.slane %v1150, 7
    %v1175 = vadd.f32 %v467, %v1159
    %v1176 = vadd.f32 %v468, %v1160
    %v1177 = vadd.f32 %v469, %v1161
    %v1178 = vadd.f32 %v470, %v1162
    %v1179 = vadd.f32 %v471, %v1163
    %v1180 = vadd.f32 %v472, %v1164
    %v1181 = vadd.f32 %v473, %v1165
    %v1182 = vadd.f32 %v474, %v1166
    %v1183 = vmul.f32 %v1055, %v509
    %v1184 = vmul.f32 %v1056, %v509
    %v1185 = vmul.f32 %v1057, %v509
    %v1186 = vmul.f32 %v1058, %v509
    %v1187 = vmul.f32 %v1059, %v509
    %v1188 = vmul.f32 %v1060, %v509
    %v1189 = vmul.f32 %v1061, %v509
    %v1190 = vmul.f32 %v1062, %v509
    %v1199 = vrot.slane %v1183, 7
    %v1200 = vrot.slane %v1184, 7
    %v1201 = vrot.slane %v1185, 7
    %v1202 = vrot.slane %v1186, 7
    %v1203 = vrot.slane %v1187, 7
    %v1204 = vrot.slane %v1188, 7
    %v1205 = vrot.slane %v1189, 7
    %v1206 = vrot.slane %v1190, 7
    %v1215 = vadd.f32 %v1175, %v1199
    %v1216 = vadd.f32 %v1176, %v1200
    %v1217 = vadd.f32 %v1177, %v1201
    %v1218 = vadd.f32 %v1178, %v1202
    %v1219 = vadd.f32 %v1179, %v1203
    %v1220 = vadd.f32 %v1180, %v1204
    %v1221 = vadd.f32 %v1181, %v1205
    %v1222 = vadd.f32 %v1182, %v1206
    %v1223 = vtanh.pop %v1135
    %v1224 = vtanh.pop %v1136
    %v1225 = vtanh.pop %v1137
    %v1226 = vtanh.pop %v1138
    %v1227 = vtanh.pop %v1139
    %v1228 = vtanh.pop %v1140
    %v1229 = vtanh.pop %v1141
    %v1230 = vtanh.pop %v1142
    %v1231 = vtanh.pop %v1215
    %v1232 = vtanh.pop %v1216
    %v1233 = vtanh.pop %v1217
    %v1234 = vtanh.pop %v1218
    %v1235 = vtanh.pop %v1219
    %v1236 = vtanh.pop %v1220
    %v1237 = vtanh.pop %v1221
    %v1238 = vtanh.pop %v1222
    %v1239 = vmul.f32 %v1223, %v476
    %v1240 = vmul.f32 %v1224, %v476
    %v1241 = vmul.f32 %v1225, %v476
    %v1242 = vmul.f32 %v1226, %v476
    %v1243 = vmul.f32 %v1227, %v476
    %v1244 = vmul.f32 %v1228, %v476
    %v1245 = vmul.f32 %v1229, %v476
    %v1246 = vmul.f32 %v1230, %v476
    %v1255 = vrot.slane %v1239, 7
    %v1256 = vrot.slane %v1240, 7
    %v1257 = vrot.slane %v1241, 7
    %v1258 = vrot.slane %v1242, 7
    %v1259 = vrot.slane %v1243, 7
    %v1260 = vrot.slane %v1244, 7
    %v1261 = vrot.slane %v1245, 7
    %v1262 = vrot.slane %v1246, 7
    %v1271 = vadd.f32 %v247, %v1255
    %v1272 = vadd.f32 %v248, %v1256
    %v1273 = vadd.f32 %v249, %v1257
    %v1274 = vadd.f32 %v250, %v1258
    %v1275 = vadd.f32 %v251, %v1259
    %v1276 = vadd.f32 %v252, %v1260
    %v1277 = vadd.f32 %v253, %v1261
    %v1278 = vadd.f32 %v254, %v1262
    %v1279 = vmul.f32 %v1231, %v487
    %v1280 = vmul.f32 %v1232, %v487
    %v1281 = vmul.f32 %v1233, %v487
    %v1282 = vmul.f32 %v1234, %v487
    %v1283 = vmul.f32 %v1235, %v487
    %v1284 = vmul.f32 %v1236, %v487
    %v1285 = vmul.f32 %v1237, %v487
    %v1286 = vmul.f32 %v1238, %v487
    %v1295 = vrot.slane %v1279, 7
    %v1296 = vrot.slane %v1280, 7
    %v1297 = vrot.slane %v1281, 7
    %v1298 = vrot.slane %v1282, 7
    %v1299 = vrot.slane %v1283, 7
    %v1300 = vrot.slane %v1284, 7
    %v1301 = vrot.slane %v1285, 7
    %v1302 = vrot.slane %v1286, 7
    %v1311 = vadd.f32 %v1271, %v1295
    %v1312 = vadd.f32 %v1272, %v1296
    %v1313 = vadd.f32 %v1273, %v1297
    %v1314 = vadd.f32 %v1274, %v1298
    %v1315 = vadd.f32 %v1275, %v1299
    %v1316 = vadd.f32 %v1276, %v1300
    %v1317 = vadd.f32 %v1277, %v1301
    %v1318 = vadd.f32 %v1278, %v1302
    %v1319 = vmul.f32 %v1223, %v498
    %v1320 = vmul.f32 %v1224, %v498
    %v1321 = vmul.f32 %v1225, %v498
    %v1322 = vmul.f32 %v1226, %v498
    %v1323 = vmul.f32 %v1227, %v498
    %v1324 = vmul.f32 %v1228, %v498
    %v1325 = vmul.f32 %v1229, %v498
    %v1326 = vmul.f32 %v1230, %v498
    %v1335 = vrot.slane %v1319, 7
    %v1336 = vrot.slane %v1320, 7
    %v1337 = vrot.slane %v1321, 7
    %v1338 = vrot.slane %v1322, 7
    %v1339 = vrot.slane %v1323, 7
    %v1340 = vrot.slane %v1324, 7
    %v1341 = vrot.slane %v1325, 7
    %v1342 = vrot.slane %v1326, 7
    %v1351 = vadd.f32 %v467, %v1335
    %v1352 = vadd.f32 %v468, %v1336
    %v1353 = vadd.f32 %v469, %v1337
    %v1354 = vadd.f32 %v470, %v1338
    %v1355 = vadd.f32 %v471, %v1339
    %v1356 = vadd.f32 %v472, %v1340
    %v1357 = vadd.f32 %v473, %v1341
    %v1358 = vadd.f32 %v474, %v1342
    %v1359 = vmul.f32 %v1231, %v509
    %v1360 = vmul.f32 %v1232, %v509
    %v1361 = vmul.f32 %v1233, %v509
    %v1362 = vmul.f32 %v1234, %v509
    %v1363 = vmul.f32 %v1235, %v509
    %v1364 = vmul.f32 %v1236, %v509
    %v1365 = vmul.f32 %v1237, %v509
    %v1366 = vmul.f32 %v1238, %v509
    %v1375 = vrot.slane %v1359, 7
    %v1376 = vrot.slane %v1360, 7
    %v1377 = vrot.slane %v1361, 7
    %v1378 = vrot.slane %v1362, 7
    %v1379 = vrot.slane %v1363, 7
    %v1380 = vrot.slane %v1364, 7
    %v1381 = vrot.slane %v1365, 7
    %v1382 = vrot.slane %v1366, 7
    %v1391 = vadd.f32 %v1351, %v1375
    %v1392 = vadd.f32 %v1352, %v1376
    %v1393 = vadd.f32 %v1353, %v1377
    %v1394 = vadd.f32 %v1354, %v1378
    %v1395 = vadd.f32 %v1355, %v1379
    %v1396 = vadd.f32 %v1356, %v1380
    %v1397 = vadd.f32 %v1357, %v1381
    %v1398 = vadd.f32 %v1358, %v1382
    %v1399 = vtanh.pop %v1311
    %v1400 = vtanh.pop %v1312
    %v1401 = vtanh.pop %v1313
    %v1402 = vtanh.pop %v1314
    %v1403 = vtanh.pop %v1315
    %v1404 = vtanh.pop %v1316
    %v1405 = vtanh.pop %v1317
    %v1406 = vtanh.pop %v1318
    %v1407 = vtanh.pop %v1391
    %v1408 = vtanh.pop %v1392
    %v1409 = vtanh.pop %v1393
    %v1410 = vtanh.pop %v1394
    %v1411 = vtanh.pop %v1395
    %v1412 = vtanh.pop %v1396
    %v1413 = vtanh.pop %v1397
    %v1414 = vtanh.pop %v1398
    %v1415 = vmul.f32 %v1399, %v476
    %v1416 = vmul.f32 %v1400, %v476
    %v1417 = vmul.f32 %v1401, %v476
    %v1418 = vmul.f32 %v1402, %v476
    %v1419 = vmul.f32 %v1403, %v476
    %v1420 = vmul.f32 %v1404, %v476
    %v1421 = vmul.f32 %v1405, %v476
    %v1422 = vmul.f32 %v1406, %v476
    %v1431 = vrot.slane %v1415, 7
    %v1432 = vrot.slane %v1416, 7
    %v1433 = vrot.slane %v1417, 7
    %v1434 = vrot.slane %v1418, 7
    %v1435 = vrot.slane %v1419, 7
    %v1436 = vrot.slane %v1420, 7
    %v1437 = vrot.slane %v1421, 7
    %v1438 = vrot.slane %v1422, 7
    %v1447 = vadd.f32 %v247, %v1431
    %v1448 = vadd.f32 %v248, %v1432
    %v1449 = vadd.f32 %v249, %v1433
    %v1450 = vadd.f32 %v250, %v1434
    %v1451 = vadd.f32 %v251, %v1435
    %v1452 = vadd.f32 %v252, %v1436
    %v1453 = vadd.f32 %v253, %v1437
    %v1454 = vadd.f32 %v254, %v1438
    %v1455 = vmul.f32 %v1407, %v487
    %v1456 = vmul.f32 %v1408, %v487
    %v1457 = vmul.f32 %v1409, %v487
    %v1458 = vmul.f32 %v1410, %v487
    %v1459 = vmul.f32 %v1411, %v487
    %v1460 = vmul.f32 %v1412, %v487
    %v1461 = vmul.f32 %v1413, %v487
    %v1462 = vmul.f32 %v1414, %v487
    %v1471 = vrot.slane %v1455, 7
    %v1472 = vrot.slane %v1456, 7
    %v1473 = vrot.slane %v1457, 7
    %v1474 = vrot.slane %v1458, 7
    %v1475 = vrot.slane %v1459, 7
    %v1476 = vrot.slane %v1460, 7
    %v1477 = vrot.slane %v1461, 7
    %v1478 = vrot.slane %v1462, 7
    %v1487 = vadd.f32 %v1447, %v1471
    %v1488 = vadd.f32 %v1448, %v1472
    %v1489 = vadd.f32 %v1449, %v1473
    %v1490 = vadd.f32 %v1450, %v1474
    %v1491 = vadd.f32 %v1451, %v1475
    %v1492 = vadd.f32 %v1452, %v1476
    %v1493 = vadd.f32 %v1453, %v1477
    %v1494 = vadd.f32 %v1454, %v1478
    %v1495 = vmul.f32 %v1399, %v498
    %v1496 = vmul.f32 %v1400, %v498
    %v1497 = vmul.f32 %v1401, %v498
    %v1498 = vmul.f32 %v1402, %v498
    %v1499 = vmul.f32 %v1403, %v498
    %v1500 = vmul.f32 %v1404, %v498
    %v1501 = vmul.f32 %v1405, %v498
    %v1502 = vmul.f32 %v1406, %v498
    %v1511 = vrot.slane %v1495, 7
    %v1512 = vrot.slane %v1496, 7
    %v1513 = vrot.slane %v1497, 7
    %v1514 = vrot.slane %v1498, 7
    %v1515 = vrot.slane %v1499, 7
    %v1516 = vrot.slane %v1500, 7
    %v1517 = vrot.slane %v1501, 7
    %v1518 = vrot.slane %v1502, 7
    %v1527 = vadd.f32 %v467, %v1511
    %v1528 = vadd.f32 %v468, %v1512
    %v1529 = vadd.f32 %v469, %v1513
    %v1530 = vadd.f32 %v470, %v1514
    %v1531 = vadd.f32 %v471, %v1515
    %v1532 = vadd.f32 %v472, %v1516
    %v1533 = vadd.f32 %v473, %v1517
    %v1534 = vadd.f32 %v474, %v1518
    %v1535 = vmul.f32 %v1407, %v509
    %v1536 = vmul.f32 %v1408, %v509
    %v1537 = vmul.f32 %v1409, %v509
    %v1538 = vmul.f32 %v1410, %v509
    %v1539 = vmul.f32 %v1411, %v509
    %v1540 = vmul.f32 %v1412, %v509
    %v1541 = vmul.f32 %v1413, %v509
    %v1542 = vmul.f32 %v1414, %v509
    %v1551 = vrot.slane %v1535, 7
    %v1552 = vrot.slane %v1536, 7
    %v1553 = vrot.slane %v1537, 7
    %v1554 = vrot.slane %v1538, 7
    %v1555 = vrot.slane %v1539, 7
    %v1556 = vrot.slane %v1540, 7
    %v1557 = vrot.slane %v1541, 7
    %v1558 = vrot.slane %v1542, 7
    %v1567 = vadd.f32 %v1527, %v1551
    %v1568 = vadd.f32 %v1528, %v1552
    %v1569 = vadd.f32 %v1529, %v1553
    %v1570 = vadd.f32 %v1530, %v1554
    %v1571 = vadd.f32 %v1531, %v1555
    %v1572 = vadd.f32 %v1532, %v1556
    %v1573 = vadd.f32 %v1533, %v1557
    %v1574 = vadd.f32 %v1534, %v1558
    %v1575 = vtanh.pop %v1487
    %v1576 = vtanh.pop %v1488
    %v1577 = vtanh.pop %v1489
    %v1578 = vtanh.pop %v1490
    %v1579 = vtanh.pop %v1491
    %v1580 = vtanh.pop %v1492
    %v1581 = vtanh.pop %v1493
    %v1582 = vtanh.pop %v1494
    %v1583 = vtanh.pop %v1567
    %v1584 = vtanh.pop %v1568
    %v1585 = vtanh.pop %v1569
    %v1586 = vtanh.pop %v1570
    %v1587 = vtanh.pop %v1571
    %v1588 = vtanh.pop %v1572
    %v1589 = vtanh.pop %v1573
    %v1590 = vtanh.pop %v1574
    %v1591 = vmul.f32 %v1575, %v476
    %v1592 = vmul.f32 %v1576, %v476
    %v1593 = vmul.f32 %v1577, %v476
    %v1594 = vmul.f32 %v1578, %v476
    %v1595 = vmul.f32 %v1579, %v476
    %v1596 = vmul.f32 %v1580, %v476
    %v1597 = vmul.f32 %v1581, %v476
    %v1598 = vmul.f32 %v1582, %v476
    %v1607 = vrot.slane %v1591, 7
    %v1608 = vrot.slane %v1592, 7
    %v1609 = vrot.slane %v1593, 7
    %v1610 = vrot.slane %v1594, 7
    %v1611 = vrot.slane %v1595, 7
    %v1612 = vrot.slane %v1596, 7
    %v1613 = vrot.slane %v1597, 7
    %v1614 = vrot.slane %v1598, 7
    %v1623 = vadd.f32 %v247, %v1607
    %v1624 = vadd.f32 %v248, %v1608
    %v1625 = vadd.f32 %v249, %v1609
    %v1626 = vadd.f32 %v250, %v1610
    %v1627 = vadd.f32 %v251, %v1611
    %v1628 = vadd.f32 %v252, %v1612
    %v1629 = vadd.f32 %v253, %v1613
    %v1630 = vadd.f32 %v254, %v1614
    %v1631 = vmul.f32 %v1583, %v487
    %v1632 = vmul.f32 %v1584, %v487
    %v1633 = vmul.f32 %v1585, %v487
    %v1634 = vmul.f32 %v1586, %v487
    %v1635 = vmul.f32 %v1587, %v487
    %v1636 = vmul.f32 %v1588, %v487
    %v1637 = vmul.f32 %v1589, %v487
    %v1638 = vmul.f32 %v1590, %v487
    %v1647 = vrot.slane %v1631, 7
    %v1648 = vrot.slane %v1632, 7
    %v1649 = vrot.slane %v1633, 7
    %v1650 = vrot.slane %v1634, 7
    %v1651 = vrot.slane %v1635, 7
    %v1652 = vrot.slane %v1636, 7
    %v1653 = vrot.slane %v1637, 7
    %v1654 = vrot.slane %v1638, 7
    %v1663 = vadd.f32 %v1623, %v1647
    %v1664 = vadd.f32 %v1624, %v1648
    %v1665 = vadd.f32 %v1625, %v1649
    %v1666 = vadd.f32 %v1626, %v1650
    %v1667 = vadd.f32 %v1627, %v1651
    %v1668 = vadd.f32 %v1628, %v1652
    %v1669 = vadd.f32 %v1629, %v1653
    %v1670 = vadd.f32 %v1630, %v1654
    %v1671 = vmul.f32 %v1575, %v498
    %v1672 = vmul.f32 %v1576, %v498
    %v1673 = vmul.f32 %v1577, %v498
    %v1674 = vmul.f32 %v1578, %v498
    %v1675 = vmul.f32 %v1579, %v498
    %v1676 = vmul.f32 %v1580, %v498
    %v1677 = vmul.f32 %v1581, %v498
    %v1678 = vmul.f32 %v1582, %v498
    %v1687 = vrot.slane %v1671, 7
    %v1688 = vrot.slane %v1672, 7
    %v1689 = vrot.slane %v1673, 7
    %v1690 = vrot.slane %v1674, 7
    %v1691 = vrot.slane %v1675, 7
    %v1692 = vrot.slane %v1676, 7
    %v1693 = vrot.slane %v1677, 7
    %v1694 = vrot.slane %v1678, 7
    %v1703 = vadd.f32 %v467, %v1687
    %v1704 = vadd.f32 %v468, %v1688
    %v1705 = vadd.f32 %v469, %v1689
    %v1706 = vadd.f32 %v470, %v1690
    %v1707 = vadd.f32 %v471, %v1691
    %v1708 = vadd.f32 %v472, %v1692
    %v1709 = vadd.f32 %v473, %v1693
    %v1710 = vadd.f32 %v474, %v1694
    %v1711 = vmul.f32 %v1583, %v509
    %v1712 = vmul.f32 %v1584, %v509
    %v1713 = vmul.f32 %v1585, %v509
    %v1714 = vmul.f32 %v1586, %v509
    %v1715 = vmul.f32 %v1587, %v509
    %v1716 = vmul.f32 %v1588, %v509
    %v1717 = vmul.f32 %v1589, %v509
    %v1718 = vmul.f32 %v1590, %v509
    %v1727 = vrot.slane %v1711, 7
    %v1728 = vrot.slane %v1712, 7
    %v1729 = vrot.slane %v1713, 7
    %v1730 = vrot.slane %v1714, 7
    %v1731 = vrot.slane %v1715, 7
    %v1732 = vrot.slane %v1716, 7
    %v1733 = vrot.slane %v1717, 7
    %v1734 = vrot.slane %v1718, 7
    %v1743 = vadd.f32 %v1703, %v1727
    %v1744 = vadd.f32 %v1704, %v1728
    %v1745 = vadd.f32 %v1705, %v1729
    %v1746 = vadd.f32 %v1706, %v1730
    %v1747 = vadd.f32 %v1707, %v1731
    %v1748 = vadd.f32 %v1708, %v1732
    %v1749 = vadd.f32 %v1709, %v1733
    %v1750 = vadd.f32 %v1710, %v1734
    %v1751 = vtanh.pop %v1663
    %v1752 = vtanh.pop %v1664
    %v1753 = vtanh.pop %v1665
    %v1754 = vtanh.pop %v1666
    %v1755 = vtanh.pop %v1667
    %v1756 = vtanh.pop %v1668
    %v1757 = vtanh.pop %v1669
    %v1758 = vtanh.pop %v1670
    %v1759 = vtanh.pop %v1743
    %v1760 = vtanh.pop %v1744
    %v1761 = vtanh.pop %v1745
    %v1762 = vtanh.pop %v1746
    %v1763 = vtanh.pop %v1747
    %v1764 = vtanh.pop %v1748
    %v1765 = vtanh.pop %v1749
    %v1766 = vtanh.pop %v1750
    %v1767 = vld [vmem:[%s2 + $0x2] sm:$0x1]
    %v1768 = vmax.f32 %v1751, 0.0
    %v1769 = vmax.f32 %v1752, 0.0
    %v1770 = vmax.f32 %v1753, 0.0
    %v1771 = vmax.f32 %v1754, 0.0
    %v1772 = vmax.f32 %v1755, 0.0
    %v1773 = vmax.f32 %v1756, 0.0
    %v1774 = vmax.f32 %v1757, 0.0
    %v1775 = vmax.f32 %v1758, 0.0
    %v1776 = vld [vmem:[%s2] sm:$0x1]
    %1778 = vset.pattern.permute.xlu0 0
    %1779 = vperm.xlu0 %1778, %v1768
    %v1780 = vpop.permute.xlu0 %1779
    %1783 = vset.pattern.permute.xlu0 0
    %1784 = vperm.xlu0 %1783, %v1769
    %v1785 = vpop.permute.xlu0 %1784
    %1788 = vset.pattern.permute.xlu0 0
    %1789 = vperm.xlu0 %1788, %v1770
    %v1790 = vpop.permute.xlu0 %1789
    %1793 = vset.pattern.permute.xlu0 0
    %1794 = vperm.xlu0 %1793, %v1771
    %v1795 = vpop.permute.xlu0 %1794
    %1798 = vset.pattern.permute.xlu0 0
    %1799 = vperm.xlu0 %1798, %v1772
    %v1800 = vpop.permute.xlu0 %1799
    %1803 = vset.pattern.permute.xlu0 0
    %1804 = vperm.xlu0 %1803, %v1773
    %v1805 = vpop.permute.xlu0 %1804
    %1808 = vset.pattern.permute.xlu0 0
    %1809 = vperm.xlu0 %1808, %v1774
    %v1810 = vpop.permute.xlu0 %1809
    %1813 = vset.pattern.permute.xlu0 0
    %1814 = vperm.xlu0 %1813, %v1775
    %v1815 = vpop.permute.xlu0 %1814
    %v1817 = vlaneseq
    %v1818 = vshrl.u32 %v1817, 7
    %v1819 = vsub.s32 0, %v1818
    %v1820 = vrot.slane %v1776, %v1819
    %v1821 = vmul.f32 %v1780, %v1820
    %v1822 = vmul.f32 %v1785, %v1820
    %v1823 = vmul.f32 %v1790, %v1820
    %v1824 = vmul.f32 %v1795, %v1820
    %v1825 = vmul.f32 %v1800, %v1820
    %v1826 = vmul.f32 %v1805, %v1820
    %v1827 = vmul.f32 %v1810, %v1820
    %v1828 = vmul.f32 %v1815, %v1820
    %v1829 = vlaneseq
    %v1830 = vshrl.u32 %v1829, 7
    %v1831 = vsub.s32 0, %v1830
    %v1832 = vrot.slane %v1767, %v1831
    %v1841 = vrot.slane %v1821, 7
    %v1842 = vrot.slane %v1822, 6
    %vm1843 = vcmask 1041409
    %v1844 = vsel %vm1843, %v1842, %v1841
    %v1845 = vrot.slane %v1823, 5
    %vm1846 = vcmask 1042434
    %v1847 = vsel %vm1846, %v1845, %v1844
    %v1848 = vrot.slane %v1824, 4
    %vm1849 = vcmask 1043459
    %v1850 = vsel %vm1849, %v1848, %v1847
    %v1851 = vrot.slane %v1825, 3
    %vm1852 = vcmask 1044484
    %v1853 = vsel %vm1852, %v1851, %v1850
    %v1854 = vrot.slane %v1826, 2
    %vm1855 = vcmask 1045509
    %v1856 = vsel %vm1855, %v1854, %v1853
    %v1857 = vrot.slane %v1827, 1
    %vm1858 = vcmask 1046534
    %v1859 = vsel %vm1858, %v1857, %v1856
    %vm1860 = vcmask 1047559
    %v1861 = vsel %vm1860, %v1828, %v1859
    %v1863 = vadd.f32 %v1832, %v1861
    %v1864 = vmax.f32 %v1759, 0.0
    %v1865 = vmax.f32 %v1760, 0.0
    %v1866 = vmax.f32 %v1761, 0.0
    %v1867 = vmax.f32 %v1762, 0.0
    %v1868 = vmax.f32 %v1763, 0.0
    %v1869 = vmax.f32 %v1764, 0.0
    %v1870 = vmax.f32 %v1765, 0.0
    %v1871 = vmax.f32 %v1766, 0.0
    %v1872 = vld [vmem:[%s2 + $0x1] sm:$0x1]
    %1874 = vset.pattern.permute.xlu0 0
    %1875 = vperm.xlu0 %1874, %v1864
    %v1876 = vpop.permute.xlu0 %1875
    %1879 = vset.pattern.permute.xlu0 0
    %1880 = vperm.xlu0 %1879, %v1865
    %v1881 = vpop.permute.xlu0 %1880
    %1884 = vset.pattern.permute.xlu0 0
    %1885 = vperm.xlu0 %1884, %v1866
    %v1886 = vpop.permute.xlu0 %1885
    %1889 = vset.pattern.permute.xlu0 0
    %1890 = vperm.xlu0 %1889, %v1867
    %v1891 = vpop.permute.xlu0 %1890
    %1894 = vset.pattern.permute.xlu0 0
    %1895 = vperm.xlu0 %1894, %v1868
    %v1896 = vpop.permute.xlu0 %1895
    %1899 = vset.pattern.permute.xlu0 0
    %1900 = vperm.xlu0 %1899, %v1869
    %v1901 = vpop.permute.xlu0 %1900
    %1904 = vset.pattern.permute.xlu0 0
    %1905 = vperm.xlu0 %1904, %v1870
    %v1906 = vpop.permute.xlu0 %1905
    %1909 = vset.pattern.permute.xlu0 0
    %1910 = vperm.xlu0 %1909, %v1871
    %v1911 = vpop.permute.xlu0 %1910
    %v1913 = vlaneseq
    %v1914 = vshrl.u32 %v1913, 7
    %v1915 = vsub.s32 0, %v1914
    %v1916 = vrot.slane %v1872, %v1915
    %v1917 = vmul.f32 %v1876, %v1916
    %v1918 = vmul.f32 %v1881, %v1916
    %v1919 = vmul.f32 %v1886, %v1916
    %v1920 = vmul.f32 %v1891, %v1916
    %v1921 = vmul.f32 %v1896, %v1916
    %v1922 = vmul.f32 %v1901, %v1916
    %v1923 = vmul.f32 %v1906, %v1916
    %v1924 = vmul.f32 %v1911, %v1916
    %v1933 = vrot.slane %v1917, 7
    %v1934 = vrot.slane %v1918, 6
    %v1935 = vsel %vm1843, %v1934, %v1933
    %v1936 = vrot.slane %v1919, 5
    %v1937 = vsel %vm1846, %v1936, %v1935
    %v1938 = vrot.slane %v1920, 4
    %v1939 = vsel %vm1849, %v1938, %v1937
    %v1940 = vrot.slane %v1921, 3
    %v1941 = vsel %vm1852, %v1940, %v1939
    %v1942 = vrot.slane %v1922, 2
    %v1943 = vsel %vm1855, %v1942, %v1941
    %v1944 = vrot.slane %v1923, 1
    %v1945 = vsel %vm1858, %v1944, %v1943
    %v1946 = vsel %vm1860, %v1924, %v1945
    %v1948 = vadd.f32 %v1863, %v1946
    %v1949 = vmax.f32 %v1948, 0.0
    %v1950 = vld [vmem:[%s2 + $0x3] sm:$0x1]
    %v1951 = vlaneseq
    %v1952 = vshrl.u32 %v1951, 7
    %v1953 = vsub.s32 0, %v1952
    %v1954 = vrot.slane %v1950, %v1953
    %v1955 = vmul.f32 %v1949, %v1954
    %1956 = vadd.xlane.f32.xlu0 %v1955
    %v1957 = vpop.xlane.xlu0 %1956
    %s1958 = sld [smem:[#allocation2 + $0x10]]
    %v1959 = vstv %s1958
    %v1960 = vadd.f32 %v1957, %v1959
    %vm1961 = vcmask 7168
    %1962 = vst.msk [vmem:[%s3] sm:$0xff] %vm1961, %v1960
    // Predicated region
    $region18: #{tpu_custom_call.1} parent=1 // pred_check
      _
    $region19: #{tpu_custom_call.1} parent=1 // pred_check_branch
      %1964 = sbr.rel (0) target = $region21
    $region20: #{tpu_custom_call.1} parent=1 // pred_region
      _
    $region21: #{tpu_custom_call.1} parent=1 // pred_fallthru
      _
    // Predicated region
    $region22: #{tpu_custom_call.1} parent=1 // pred_check
      _
    $region23: #{tpu_custom_call.1} parent=1 // pred_check_branch
      %1966 = sbr.rel (0) target = $region25
    $region24: #{tpu_custom_call.1} parent=1 // pred_region
      _
    $region25: #{tpu_custom_call.1} parent=1 // pred_fallthru
      _
    %1967 = vsyncpa [#allocation3], 1

</llo_original>
